<compile_context>
chip_gen: v7x
topology: tpu7x:2x2x1
jax: 0.10.0
libtpu: 0.0.40
codegen_flags: <defaults>
</compile_context>

<pallas_src>
import functools

import jax
import jax.numpy as jnp
from jax.experimental import pallas as pl
from jax.experimental.pallas import tpu as pltpu

_SQRT_HALF = 0.7071067811865476
_GELU_K = 0.7978845608028654       # sqrt(2/pi)
_H_G1 = 512                        # grade branch hidden 1
_H_G2 = 256                        # grade branch hidden 2
_H_ORD = 256                       # ordinal branch hidden
_OUT_PAD = 128                     # lane-dense padded output width


def _gelu_erf(x):
    # PyTorch nn.GELU() default: 0.5*x*(1+erf(x/sqrt(2)))  (VALU polynomial)
    return 0.5 * x * (1.0 + jax.lax.erf(x * _SQRT_HALF))


def _gelu_tanh(x):
    # tanh approximation -> transcendental goes to the EUP slot; |err| <~ 1e-3.
    return 0.5 * x * (1.0 + jnp.tanh(_GELU_K * (x + 0.044715 * x * x * x)))


def _head_kernel(x_ref, w1_ref, b1_ref, w2_ref, b2_ref,
                 w3h_ref, w3o_ref, b3_ref, out_ref, *, gelu):
    x = x_ref[...]

    # Stage 1: fused first layers of both branches (BN folded into W1/B1).
    y = jnp.dot(x, w1_ref[...], preferred_element_type=jnp.float32) + b1_ref[...]
    y = gelu(y)                              # Dropout -> identity (eval)
    h = y[:, :_H_G1]                         # grade hidden   [bt, 512] (lane-aligned)
    o = y[:, _H_G1:]                         # ordinal hidden [bt, 256]

    # Stage 2: grade branch second layer (BN folded into W2/B2).
    h = gelu(jnp.dot(h, w2_ref[...], preferred_element_type=jnp.float32)
             + b2_ref[...])                  # [bt, 256]

    # Stage 3: block-diagonal final projection as two K=256 dots (no concat
    # copy), one lane-dense (bt, 128) store:
    #   cols [0, ng) = grade logits, [ng, 2*ng-1) = ordinal thresholds, rest 0.
    out_ref[...] = (jnp.dot(h, w3h_ref[...], preferred_element_type=jnp.float32)
                    + jnp.dot(o, w3o_ref[...], preferred_element_type=jnp.float32)
                    + b3_ref[...])


def _round_up(v, m):
    return ((v + m - 1) // m) * m


def grade_consistency_head(x, packed, *, block_b=1024, exact_gelu=False):
    """x: [B, F] float32. packed: output of pack_params. Returns (logits, ordinal)."""
    B, F = x.shape
    ng = int(packed["num_grades"])

    # Batch tile: multiple of 8 sublanes; >=2 grid steps whenever B > 8 so the
    # 'parallel' grid axis can use both v7x TensorCores; capped at block_b
    # (large tiles amortize per-step overhead on single-core v5e/v6e).
    bt = max(8, min(block_b, _round_up(pl.cdiv(B, 2), 8)))
    grid = (pl.cdiv(B, bt),)

    gelu = _gelu_erf if exact_gelu else _gelu_tanh
    kernel = functools.partial(_head_kernel, gelu=gelu)

    out_shape = jax.ShapeDtypeStruct((B, _OUT_PAD), jnp.float32)
    out_spec = pl.BlockSpec((bt, _OUT_PAD), lambda i: (i, 0))
    const = lambda i: (0, 0)  # resident weights / biases

    flops = 2 * B * (F * (_H_G1 + _H_ORD) + _H_G1 * _H_G2
                     + (_H_G2 + _H_ORD) * _OUT_PAD)
    transcendentals = B * (_H_G1 + _H_ORD + _H_G2)
    bytes_accessed = 4 * (B * F + B * _OUT_PAD
                          + F * (_H_G1 + _H_ORD) + (_H_G1 + _H_ORD)
                          + _H_G1 * _H_G2 + _H_G2
                          + (_H_G2 + _H_ORD + 1) * _OUT_PAD)

    def build(weight_mode):
        def wspec(shape):
            return pl.BlockSpec(shape, const, pipeline_mode=weight_mode)
        in_specs = [
            pl.BlockSpec((bt, F), lambda i: (i, 0)),       # x tile
            wspec((F, _H_G1 + _H_ORD)),                    # W1  [F, 768]
            wspec((1, _H_G1 + _H_ORD)),                    # B1  [1, 768]
            wspec((_H_G1, _H_G2)),                         # W2  [512, 256]
            wspec((1, _H_G2)),                             # B2  [1, 256]
            wspec((_H_G2, _OUT_PAD)),                      # W3H [256, 128]
            wspec((_H_ORD, _OUT_PAD)),                     # W3O [256, 128]
            wspec((1, _OUT_PAD)),                          # B3  [1, 128]
        ]
        return pl.pallas_call(
            kernel,
            out_shape=out_shape,
            grid=grid,
            in_specs=in_specs,
            out_specs=out_spec,
            compiler_params=pltpu.CompilerParams(
                dimension_semantics=("parallel",),
                vmem_limit_bytes=48 * 1024 * 1024,   # safe on v7x's 64 MiB VMEM
            ),
            cost_estimate=pl.CostEstimate(
                flops=flops,
                transcendentals=transcendentals,
                bytes_accessed=bytes_accessed,
            ),
        )

    args = (x, packed["W1"], packed["B1"], packed["W2"], packed["B2"],
            packed["W3H"], packed["W3O"], packed["B3"])
    try:
        # Single-buffer the constant-index resident weights (one DMA each).
        out = build(pl.Buffered(1))(*args)
        out = jax.block_until_ready(out)
    except Exception:
        # Fallback: default double-buffering if pipeline_mode isn't supported.
        out = build(None)(*args)

    valid = out[:B, : 2 * ng - 1]            # single slice of the padded slab
    return valid[:, :ng], valid[:, ng:]


# ---------------------------------------------------------------------------
# Host-side parameter construction / fusion.
# ---------------------------------------------------------------------------
def make_params(key, feature_dim, num_grades=5, eps=1e-5):
    """Raw per-layer params (PyTorch-layout analogue, weights pre-transposed)."""
    ks = jax.random.split(key, 10)

    def lin(kw, kb, fan_in, fan_out):
        bound = 1.0 / jnp.sqrt(fan_in)
        w = jax.random.uniform(kw, (fan_in, fan_out), jnp.float32, -bound, bound)
        b = jax.random.uniform(kb, (1, fan_out), jnp.float32, -bound, bound)
        return w, b

    w1t, b1 = lin(ks[0], ks[1], feature_dim, _H_G1)
    w2t, b2 = lin(ks[2], ks[3], _H_G1, _H_G2)
    w3t, b3 = lin(ks[4], ks[5], _H_G2, num_grades)
    w4t, b4 = lin(ks[6], ks[7], feature_dim, _H_ORD)
    w5t, b5 = lin(ks[8], ks[9], _H_ORD, num_grades - 1)

    # BatchNorm1d (fresh module): gamma=1, beta=0, running_mean=0, running_var=1.
    def bn_fold(n):
        gamma = jnp.ones((1, n), jnp.float32)
        beta = jnp.zeros((1, n), jnp.float32)
        rm = jnp.zeros((1, n), jnp.float32)
        rv = jnp.ones((1, n), jnp.float32)
        scale = gamma / jnp.sqrt(rv + eps)
        shift = beta - rm * scale
        return scale, shift

    bn1_scale, bn1_shift = bn_fold(_H_G1)
    bn2_scale, bn2_shift = bn_fold(_H_G2)

    return dict(
        w1t=w1t, b1=b1, bn1_scale=bn1_scale, bn1_shift=bn1_shift,
        w2t=w2t, b2=b2, bn2_scale=bn2_scale, bn2_shift=bn2_shift,
        w3t=w3t, b3=b3,
        w4t=w4t, b4=b4,
        w5t=w5t, b5=b5,
    )


def pack_params(p):
    """Fold BN into weights, fuse both branches' first layers, split the padded
    block-diagonal final projection into two lane-padded [256,128] halves."""
    ng = p["w3t"].shape[1]
    n_out = ng + p["w5t"].shape[1]          # 2*ng - 1
    assert n_out <= _OUT_PAD

    # Layer 1 of both branches, BN folded into the grade-branch half.
    w1f = p["w1t"] * p["bn1_scale"]
    b1f = p["b1"] * p["bn1_scale"] + p["bn1_shift"]
    W1 = jnp.concatenate([w1f, p["w4t"]], axis=1)        # [F, 768]
    B1 = jnp.concatenate([b1f, p["b4"]], axis=1)         # [1, 768]

    # Layer 2 of the grade branch, BN folded.
    W2 = p["w2t"] * p["bn2_scale"]                       # [512, 256]
    B2 = p["b2"] * p["bn2_scale"] + p["bn2_shift"]       # [1, 256]

    # Final projections, zero-padded to 128 lanes, split per branch (no concat
    # needed inside the kernel).
    W3H = jnp.zeros((_H_G2, _OUT_PAD), jnp.float32).at[:, :ng].set(p["w3t"])
    W3O = jnp.zeros((_H_ORD, _OUT_PAD), jnp.float32).at[:, ng:n_out].set(p["w5t"])
    B3 = jnp.zeros((1, _OUT_PAD), jnp.float32)
    B3 = B3.at[:, :ng].set(p["b3"]).at[:, ng:n_out].set(p["b5"])

    return dict(W1=W1, B1=B1, W2=W2, B2=B2, W3H=W3H, W3O=W3O, B3=B3,
                num_grades=ng)


def _reference(x, p, *, approximate):
    g = _gelu_tanh if approximate else _gelu_erf
    h = x @ p["w1t"] + p["b1"]
    h = g(h * p["bn1_scale"] + p["bn1_shift"])
    h = h @ p["w2t"] + p["b2"]
    h = g(h * p["bn2_scale"] + p["bn2_shift"])
    logits = h @ p["w3t"] + p["b3"]
    o = g(x @ p["w4t"] + p["b4"])
    ordinal = o @ p["w5t"] + p["b5"]
    return logits, ordinal


if __name__ == "__main__":
    B, FEATURE_DIM, NUM_GRADES = 8, 32, 5

    key = jax.random.PRNGKey(0)
    kx, kp = jax.random.split(key)
    x = jax.random.normal(kx, (B, FEATURE_DIM), jnp.float32)
    raw_params = make_params(kp, FEATURE_DIM, NUM_GRADES)
    packed = pack_params(raw_params)

    logits, ordinal = grade_consistency_head(x, packed)
    jax.block_until_ready((logits, ordinal))

    assert logits.shape == (B, NUM_GRADES)
    assert ordinal.shape == (B, NUM_GRADES - 1)

    # Tight check of the kernel plumbing (same tanh-approx GELU as the kernel).
    ref_l_a, ref_o_a = _reference(x, raw_params, approximate=True)
    assert jnp.allclose(logits, ref_l_a, atol=1e-4, rtol=1e-4)
    assert jnp.allclose(ordinal, ref_o_a, atol=1e-4, rtol=1e-4)

    # Module-semantics check vs PyTorch's exact erf GELU (tanh approx deviates
    # by <~1e-3; use exact_gelu=True for bit-level parity).
    ref_l_e, ref_o_e = _reference(x, raw_params, approximate=False)
    assert jnp.allclose(logits, ref_l_e, atol=5e-3, rtol=5e-3)
    assert jnp.allclose(ordinal, ref_o_e, atol=5e-3, rtol=5e-3)

    print("KERNEL_OK")
</pallas_src>

<mosaic_0001>
module attributes {stable_mosaic.version = 11 : i64} {
  func.func @_head_kernel(%arg0: i32, %arg1: memref<8x32xf32, #tpu.memory_space<vmem>>, %arg2: memref<32x768xf32, #tpu.memory_space<vmem>>, %arg3: memref<1x768xf32, #tpu.memory_space<vmem>>, %arg4: memref<512x256xf32, #tpu.memory_space<vmem>>, %arg5: memref<1x256xf32, #tpu.memory_space<vmem>>, %arg6: memref<256x128xf32, #tpu.memory_space<vmem>>, %arg7: memref<256x128xf32, #tpu.memory_space<vmem>>, %arg8: memref<1x128xf32, #tpu.memory_space<vmem>>, %arg9: memref<8x128xf32, #tpu.memory_space<vmem>>) attributes {dimension_semantics = [#tpu.dimension_semantics<parallel>], iteration_bounds = array<i64: 1>, scalar_prefetch = 0 : i64, scratch_operands = 0 : i64, tpu.core_type = #tpu.core_type<tc>, window_params = [{transform_indices = @transform_0, window_bounds = array<i64: 8, 32>}, {pipeline_mode = #tpu.pipeline_mode<synchronous>, transform_indices = @transform_1, window_bounds = array<i64: 32, 768>}, {pipeline_mode = #tpu.pipeline_mode<synchronous>, transform_indices = @transform_2, window_bounds = array<i64: 1, 768>}, {pipeline_mode = #tpu.pipeline_mode<synchronous>, transform_indices = @transform_3, window_bounds = array<i64: 512, 256>}, {pipeline_mode = #tpu.pipeline_mode<synchronous>, transform_indices = @transform_4, window_bounds = array<i64: 1, 256>}, {pipeline_mode = #tpu.pipeline_mode<synchronous>, transform_indices = @transform_5, window_bounds = array<i64: 256, 128>}, {pipeline_mode = #tpu.pipeline_mode<synchronous>, transform_indices = @transform_6, window_bounds = array<i64: 256, 128>}, {pipeline_mode = #tpu.pipeline_mode<synchronous>, transform_indices = @transform_7, window_bounds = array<i64: 1, 128>}, {transform_indices = @transform_8, window_bounds = array<i64: 8, 128>}]} {
    %c0 = arith.constant 0 : index
    %c0_0 = arith.constant 0 : index
    %0 = vector.load %arg1[%c0, %c0_0] : memref<8x32xf32, #tpu.memory_space<vmem>>, vector<8x32xf32>
    %c0_1 = arith.constant 0 : index
    %c0_2 = arith.constant 0 : index
    %1 = vector.load %arg2[%c0_1, %c0_2] : memref<32x768xf32, #tpu.memory_space<vmem>>, vector<32x768xf32>
    %cst = arith.constant dense<0.000000e+00> : vector<8x768xf32>
    %2 = tpu.matmul %0, %1, %cst {dimension_numbers = #tpu.dot_dimension_numbers<[1], [0], [0], [1], [0, 0, 1, 1], [], []>} : vector<8x32xf32>, vector<32x768xf32>, vector<8x768xf32> -> vector<8x768xf32>
    %c0_3 = arith.constant 0 : index
    %c0_4 = arith.constant 0 : index
    %3 = vector.load %arg3[%c0_3, %c0_4] : memref<1x768xf32, #tpu.memory_space<vmem>>, vector<1x768xf32>
    %4 = vector.broadcast %3 : vector<1x768xf32> to vector<8x768xf32>
    %5 = arith.addf %2, %4 : vector<8x768xf32>
    %cst_5 = arith.constant 5.000000e-01 : f32
    %6 = vector.broadcast %cst_5 : f32 to vector<8x768xf32>
    %7 = arith.mulf %6, %5 : vector<8x768xf32>
    %cst_6 = arith.constant 4.471500e-02 : f32
    %8 = vector.broadcast %cst_6 : f32 to vector<8x768xf32>
    %9 = arith.mulf %8, %5 : vector<8x768xf32>
    %10 = arith.mulf %9, %5 : vector<8x768xf32>
    %11 = arith.mulf %10, %5 : vector<8x768xf32>
    %12 = arith.addf %5, %11 : vector<8x768xf32>
    %cst_7 = arith.constant 0.797884583 : f32
    %13 = vector.broadcast %cst_7 : f32 to vector<8x768xf32>
    %14 = arith.mulf %13, %12 : vector<8x768xf32>
    %15 = math.tanh %14 : vector<8x768xf32>
    %cst_8 = arith.constant 1.000000e+00 : f32
    %16 = vector.broadcast %cst_8 : f32 to vector<8x768xf32>
    %17 = arith.addf %16, %15 : vector<8x768xf32>
    %18 = arith.mulf %7, %17 : vector<8x768xf32>
    %19 = vector.extract_strided_slice %18 {offsets = [0, 0], sizes = [8, 512], strides = [1, 1]} : vector<8x768xf32> to vector<8x512xf32>
    %20 = vector.extract_strided_slice %18 {offsets = [0, 512], sizes = [8, 256], strides = [1, 1]} : vector<8x768xf32> to vector<8x256xf32>
    %c0_9 = arith.constant 0 : index
    %c0_10 = arith.constant 0 : index
    %21 = vector.load %arg4[%c0_9, %c0_10] : memref<512x256xf32, #tpu.memory_space<vmem>>, vector<512x256xf32>
    %cst_11 = arith.constant dense<0.000000e+00> : vector<8x256xf32>
    %22 = tpu.matmul %19, %21, %cst_11 {dimension_numbers = #tpu.dot_dimension_numbers<[1], [0], [0], [1], [0, 0, 1, 1], [], []>} : vector<8x512xf32>, vector<512x256xf32>, vector<8x256xf32> -> vector<8x256xf32>
    %c0_12 = arith.constant 0 : index
    %c0_13 = arith.constant 0 : index
    %23 = vector.load %arg5[%c0_12, %c0_13] : memref<1x256xf32, #tpu.memory_space<vmem>>, vector<1x256xf32>
    %24 = vector.broadcast %23 : vector<1x256xf32> to vector<8x256xf32>
    %25 = arith.addf %22, %24 : vector<8x256xf32>
    %cst_14 = arith.constant 5.000000e-01 : f32
    %26 = vector.broadcast %cst_14 : f32 to vector<8x256xf32>
    %27 = arith.mulf %26, %25 : vector<8x256xf32>
    %cst_15 = arith.constant 4.471500e-02 : f32
    %28 = vector.broadcast %cst_15 : f32 to vector<8x256xf32>
    %29 = arith.mulf %28, %25 : vector<8x256xf32>
    %30 = arith.mulf %29, %25 : vector<8x256xf32>
    %31 = arith.mulf %30, %25 : vector<8x256xf32>
    %32 = arith.addf %25, %31 : vector<8x256xf32>
    %cst_16 = arith.constant 0.797884583 : f32
    %33 = vector.broadcast %cst_16 : f32 to vector<8x256xf32>
    %34 = arith.mulf %33, %32 : vector<8x256xf32>
    %35 = math.tanh %34 : vector<8x256xf32>
    %cst_17 = arith.constant 1.000000e+00 : f32
    %36 = vector.broadcast %cst_17 : f32 to vector<8x256xf32>
    %37 = arith.addf %36, %35 : vector<8x256xf32>
    %38 = arith.mulf %27, %37 : vector<8x256xf32>
    %c0_18 = arith.constant 0 : index
    %c0_19 = arith.constant 0 : index
    %39 = vector.load %arg6[%c0_18, %c0_19] : memref<256x128xf32, #tpu.memory_space<vmem>>, vector<256x128xf32>
    %cst_20 = arith.constant dense<0.000000e+00> : vector<8x128xf32>
    %40 = tpu.matmul %38, %39, %cst_20 {dimension_numbers = #tpu.dot_dimension_numbers<[1], [0], [0], [1], [0, 0, 1, 1], [], []>} : vector<8x256xf32>, vector<256x128xf32>, vector<8x128xf32> -> vector<8x128xf32>
    %c0_21 = arith.constant 0 : index
    %c0_22 = arith.constant 0 : index
    %41 = vector.load %arg7[%c0_21, %c0_22] : memref<256x128xf32, #tpu.memory_space<vmem>>, vector<256x128xf32>
    %cst_23 = arith.constant dense<0.000000e+00> : vector<8x128xf32>
    %42 = tpu.matmul %20, %41, %cst_23 {dimension_numbers = #tpu.dot_dimension_numbers<[1], [0], [0], [1], [0, 0, 1, 1], [], []>} : vector<8x256xf32>, vector<256x128xf32>, vector<8x128xf32> -> vector<8x128xf32>
    %43 = arith.addf %40, %42 : vector<8x128xf32>
    %c0_24 = arith.constant 0 : index
    %c0_25 = arith.constant 0 : index
    %44 = vector.load %arg8[%c0_24, %c0_25] : memref<1x128xf32, #tpu.memory_space<vmem>>, vector<1x128xf32>
    %45 = vector.broadcast %44 : vector<1x128xf32> to vector<8x128xf32>
    %46 = arith.addf %43, %45 : vector<8x128xf32>
    %c0_26 = arith.constant 0 : index
    %c0_27 = arith.constant 0 : index
    %47 = vector.load %arg9[%c0_26, %c0_27] : memref<8x128xf32, #tpu.memory_space<vmem>>, vector<8x128xf32>
    tpu.vector_store %arg9[%c0_26, %c0_27], %46 {strides = array<i32>} : memref<8x128xf32, #tpu.memory_space<vmem>>, vector<8x128xf32>,
    return
  }
  func.func @transform_0(%arg0: i32) -> (i32, i32) {
    %c0_i32 = arith.constant 0 : i32
    %c0_i32_0 = arith.constant 0 : i32
    return %arg0, %c0_i32 : i32, i32
  }
  func.func @transform_1(%arg0: i32) -> (i32, i32) {
    %c0_i32 = arith.constant 0 : i32
    %c0_i32_0 = arith.constant 0 : i32
    %c0_i32_1 = arith.constant 0 : i32
    return %c0_i32, %c0_i32_0 : i32, i32
  }
  func.func @transform_2(%arg0: i32) -> (i32, i32) {
    %c0_i32 = arith.constant 0 : i32
    %c0_i32_0 = arith.constant 0 : i32
    %c0_i32_1 = arith.constant 0 : i32
    return %c0_i32, %c0_i32_0 : i32, i32
  }
  func.func @transform_3(%arg0: i32) -> (i32, i32) {
    %c0_i32 = arith.constant 0 : i32
    %c0_i32_0 = arith.constant 0 : i32
    %c0_i32_1 = arith.constant 0 : i32
    return %c0_i32, %c0_i32_0 : i32, i32
  }
  func.func @transform_4(%arg0: i32) -> (i32, i32) {
    %c0_i32 = arith.constant 0 : i32
    %c0_i32_0 = arith.constant 0 : i32
    %c0_i32_1 = arith.constant 0 : i32
    return %c0_i32, %c0_i32_0 : i32, i32
  }
  func.func @transform_5(%arg0: i32) -> (i32, i32) {
    %c0_i32 = arith.constant 0 : i32
    %c0_i32_0 = arith.constant 0 : i32
    %c0_i32_1 = arith.constant 0 : i32
    return %c0_i32, %c0_i32_0 : i32, i32
  }
  func.func @transform_6(%arg0: i32) -> (i32, i32) {
    %c0_i32 = arith.constant 0 : i32
    %c0_i32_0 = arith.constant 0 : i32
    %c0_i32_1 = arith.constant 0 : i32
    return %c0_i32, %c0_i32_0 : i32, i32
  }
  func.func @transform_7(%arg0: i32) -> (i32, i32) {
    %c0_i32 = arith.constant 0 : i32
    %c0_i32_0 = arith.constant 0 : i32
    %c0_i32_1 = arith.constant 0 : i32
    return %c0_i32, %c0_i32_0 : i32, i32
  }
  func.func @transform_8(%arg0: i32) -> (i32, i32) {
    %c0_i32 = arith.constant 0 : i32
    %c0_i32_0 = arith.constant 0 : i32
    return %arg0, %c0_i32 : i32, i32
  }
}

module attributes {stable_mosaic.version = 11 : i64} {
  func.func @_head_kernel(%arg0: i32, %arg1: memref<8x32xf32, #tpu.memory_space<vmem>>, %arg2: memref<32x768xf32, #tpu.memory_space<vmem>>, %arg3: memref<1x768xf32, #tpu.memory_space<vmem>>, %arg4: memref<512x256xf32, #tpu.memory_space<vmem>>, %arg5: memref<1x256xf32, #tpu.memory_space<vmem>>, %arg6: memref<256x128xf32, #tpu.memory_space<vmem>>, %arg7: memref<256x128xf32, #tpu.memory_space<vmem>>, %arg8: memref<1x128xf32, #tpu.memory_space<vmem>>, %arg9: memref<8x128xf32, #tpu.memory_space<vmem>>) attributes {dimension_semantics = [#tpu.dimension_semantics<parallel>], iteration_bounds = array<i64: 1>, scalar_prefetch = 0 : i64, scratch_operands = 0 : i64, tpu.core_type = #tpu.core_type<tc>, window_params = [{transform_indices = @transform_0, window_bounds = array<i64: 8, 32>}, {pipeline_mode = #tpu.pipeline_mode<synchronous>, transform_indices = @transform_1, window_bounds = array<i64: 32, 768>}, {pipeline_mode = #tpu.pipeline_mode<synchronous>, transform_indices = @transform_2, window_bounds = array<i64: 1, 768>}, {pipeline_mode = #tpu.pipeline_mode<synchronous>, transform_indices = @transform_3, window_bounds = array<i64: 512, 256>}, {pipeline_mode = #tpu.pipeline_mode<synchronous>, transform_indices = @transform_4, window_bounds = array<i64: 1, 256>}, {pipeline_mode = #tpu.pipeline_mode<synchronous>, transform_indices = @transform_5, window_bounds = array<i64: 256, 128>}, {pipeline_mode = #tpu.pipeline_mode<synchronous>, transform_indices = @transform_6, window_bounds = array<i64: 256, 128>}, {pipeline_mode = #tpu.pipeline_mode<synchronous>, transform_indices = @transform_7, window_bounds = array<i64: 1, 128>}, {transform_indices = @transform_8, window_bounds = array<i64: 8, 128>}]} {
    %c0 = arith.constant 0 : index
    %c0_0 = arith.constant 0 : index
    %0 = vector.load %arg1[%c0, %c0_0] : memref<8x32xf32, #tpu.memory_space<vmem>>, vector<8x32xf32>
    %c0_1 = arith.constant 0 : index
    %c0_2 = arith.constant 0 : index
    %1 = vector.load %arg2[%c0_1, %c0_2] : memref<32x768xf32, #tpu.memory_space<vmem>>, vector<32x768xf32>
    %cst = arith.constant dense<0.000000e+00> : vector<8x768xf32>
    %2 = tpu.matmul %0, %1, %cst {dimension_numbers = #tpu.dot_dimension_numbers<[1], [0], [0], [1], [0, 0, 1, 1], [], []>} : vector<8x32xf32>, vector<32x768xf32>, vector<8x768xf32> -> vector<8x768xf32>
    %c0_3 = arith.constant 0 : index
    %c0_4 = arith.constant 0 : index
    %3 = vector.load %arg3[%c0_3, %c0_4] : memref<1x768xf32, #tpu.memory_space<vmem>>, vector<1x768xf32>
    %4 = vector.broadcast %3 : vector<1x768xf32> to vector<8x768xf32>
    %5 = arith.addf %2, %4 : vector<8x768xf32>
    %cst_5 = arith.constant 5.000000e-01 : f32
    %6 = vector.broadcast %cst_5 : f32 to vector<8x768xf32>
    %7 = arith.mulf %6, %5 : vector<8x768xf32>
    %cst_6 = arith.constant 4.471500e-02 : f32
    %8 = vector.broadcast %cst_6 : f32 to vector<8x768xf32>
    %9 = arith.mulf %8, %5 : vector<8x768xf32>
    %10 = arith.mulf %9, %5 : vector<8x768xf32>
    %11 = arith.mulf %10, %5 : vector<8x768xf32>
    %12 = arith.addf %5, %11 : vector<8x768xf32>
    %cst_7 = arith.constant 0.797884583 : f32
    %13 = vector.broadcast %cst_7 : f32 to vector<8x768xf32>
    %14 = arith.mulf %13, %12 : vector<8x768xf32>
    %15 = math.tanh %14 : vector<8x768xf32>
    %cst_8 = arith.constant 1.000000e+00 : f32
    %16 = vector.broadcast %cst_8 : f32 to vector<8x768xf32>
    %17 = arith.addf %16, %15 : vector<8x768xf32>
    %18 = arith.mulf %7, %17 : vector<8x768xf32>
    %19 = vector.extract_strided_slice %18 {offsets = [0, 0], sizes = [8, 512], strides = [1, 1]} : vector<8x768xf32> to vector<8x512xf32>
    %20 = vector.extract_strided_slice %18 {offsets = [0, 512], sizes = [8, 256], strides = [1, 1]} : vector<8x768xf32> to vector<8x256xf32>
    %c0_9 = arith.constant 0 : index
    %c0_10 = arith.constant 0 : index
    %21 = vector.load %arg4[%c0_9, %c0_10] : memref<512x256xf32, #tpu.memory_space<vmem>>, vector<512x256xf32>
    %cst_11 = arith.constant dense<0.000000e+00> : vector<8x256xf32>
    %22 = tpu.matmul %19, %21, %cst_11 {dimension_numbers = #tpu.dot_dimension_numbers<[1], [0], [0], [1], [0, 0, 1, 1], [], []>} : vector<8x512xf32>, vector<512x256xf32>, vector<8x256xf32> -> vector<8x256xf32>
    %c0_12 = arith.constant 0 : index
    %c0_13 = arith.constant 0 : index
    %23 = vector.load %arg5[%c0_12, %c0_13] : memref<1x256xf32, #tpu.memory_space<vmem>>, vector<1x256xf32>
    %24 = vector.broadcast %23 : vector<1x256xf32> to vector<8x256xf32>
    %25 = arith.addf %22, %24 : vector<8x256xf32>
    %cst_14 = arith.constant 5.000000e-01 : f32
    %26 = vector.broadcast %cst_14 : f32 to vector<8x256xf32>
    %27 = arith.mulf %26, %25 : vector<8x256xf32>
    %cst_15 = arith.constant 4.471500e-02 : f32
    %28 = vector.broadcast %cst_15 : f32 to vector<8x256xf32>
    %29 = arith.mulf %28, %25 : vector<8x256xf32>
    %30 = arith.mulf %29, %25 : vector<8x256xf32>
    %31 = arith.mulf %30, %25 : vector<8x256xf32>
    %32 = arith.addf %25, %31 : vector<8x256xf32>
    %cst_16 = arith.constant 0.797884583 : f32
    %33 = vector.broadcast %cst_16 : f32 to vector<8x256xf32>
    %34 = arith.mulf %33, %32 : vector<8x256xf32>
    %35 = math.tanh %34 : vector<8x256xf32>
    %cst_17 = arith.constant 1.000000e+00 : f32
    %36 = vector.broadcast %cst_17 : f32 to vector<8x256xf32>
    %37 = arith.addf %36, %35 : vector<8x256xf32>
    %38 = arith.mulf %27, %37 : vector<8x256xf32>
    %c0_18 = arith.constant 0 : index
    %c0_19 = arith.constant 0 : index
    %39 = vector.load %arg6[%c0_18, %c0_19] : memref<256x128xf32, #tpu.memory_space<vmem>>, vector<256x128xf32>
    %cst_20 = arith.constant dense<0.000000e+00> : vector<8x128xf32>
    %40 = tpu.matmul %38, %39, %cst_20 {dimension_numbers = #tpu.dot_dimension_numbers<[1], [0], [0], [1], [0, 0, 1, 1], [], []>} : vector<8x256xf32>, vector<256x128xf32>, vector<8x128xf32> -> vector<8x128xf32>
    %c0_21 = arith.constant 0 : index
    %c0_22 = arith.constant 0 : index
    %41 = vector.load %arg7[%c0_21, %c0_22] : memref<256x128xf32, #tpu.memory_space<vmem>>, vector<256x128xf32>
    %cst_23 = arith.constant dense<0.000000e+00> : vector<8x128xf32>
    %42 = tpu.matmul %20, %41, %cst_23 {dimension_numbers = #tpu.dot_dimension_numbers<[1], [0], [0], [1], [0, 0, 1, 1], [], []>} : vector<8x256xf32>, vector<256x128xf32>, vector<8x128xf32> -> vector<8x128xf32>
    %43 = arith.addf %40, %42 : vector<8x128xf32>
    %c0_24 = arith.constant 0 : index
    %c0_25 = arith.constant 0 : index
    %44 = vector.load %arg8[%c0_24, %c0_25] : memref<1x128xf32, #tpu.memory_space<vmem>>, vector<1x128xf32>
    %45 = vector.broadcast %44 : vector<1x128xf32> to vector<8x128xf32>
    %46 = arith.addf %43, %45 : vector<8x128xf32>
    %c0_26 = arith.constant 0 : index
    %c0_27 = arith.constant 0 : index
    %47 = vector.load %arg9[%c0_26, %c0_27] : memref<8x128xf32, #tpu.memory_space<vmem>>, vector<8x128xf32>
    tpu.vector_store %arg9[%c0_26, %c0_27], %46 {strides = array<i32>} : memref<8x128xf32, #tpu.memory_space<vmem>>, vector<8x128xf32>,
    return
  }
  func.func @transform_0(%arg0: i32) -> (i32, i32) {
    %c0_i32 = arith.constant 0 : i32
    %c0_i32_0 = arith.constant 0 : i32
    return %arg0, %c0_i32 : i32, i32
  }
  func.func @transform_1(%arg0: i32) -> (i32, i32) {
    %c0_i32 = arith.constant 0 : i32
    %c0_i32_0 = arith.constant 0 : i32
    %c0_i32_1 = arith.constant 0 : i32
    return %c0_i32, %c0_i32_0 : i32, i32
  }
  func.func @transform_2(%arg0: i32) -> (i32, i32) {
    %c0_i32 = arith.constant 0 : i32
    %c0_i32_0 = arith.constant 0 : i32
    %c0_i32_1 = arith.constant 0 : i32
    return %c0_i32, %c0_i32_0 : i32, i32
  }
  func.func @transform_3(%arg0: i32) -> (i32, i32) {
    %c0_i32 = arith.constant 0 : i32
    %c0_i32_0 = arith.constant 0 : i32
    %c0_i32_1 = arith.constant 0 : i32
    return %c0_i32, %c0_i32_0 : i32, i32
  }
  func.func @transform_4(%arg0: i32) -> (i32, i32) {
    %c0_i32 = arith.constant 0 : i32
    %c0_i32_0 = arith.constant 0 : i32
    %c0_i32_1 = arith.constant 0 : i32
    return %c0_i32, %c0_i32_0 : i32, i32
  }
  func.func @transform_5(%arg0: i32) -> (i32, i32) {
    %c0_i32 = arith.constant 0 : i32
    %c0_i32_0 = arith.constant 0 : i32
    %c0_i32_1 = arith.constant 0 : i32
    return %c0_i32, %c0_i32_0 : i32, i32
  }
  func.func @transform_6(%arg0: i32) -> (i32, i32) {
    %c0_i32 = arith.constant 0 : i32
    %c0_i32_0 = arith.constant 0 : i32
    %c0_i32_1 = arith.constant 0 : i32
    return %c0_i32, %c0_i32_0 : i32, i32
  }
  func.func @transform_7(%arg0: i32) -> (i32, i32) {
    %c0_i32 = arith.constant 0 : i32
    %c0_i32_0 = arith.constant 0 : i32
    %c0_i32_1 = arith.constant 0 : i32
    return %c0_i32, %c0_i32_0 : i32, i32
  }
  func.func @transform_8(%arg0: i32) -> (i32, i32) {
    %c0_i32 = arith.constant 0 : i32
    %c0_i32_0 = arith.constant 0 : i32
    return %arg0, %c0_i32 : i32, i32
  }
}

</mosaic_0001>

<llo_original>
// kernel: tpu_custom_call.1
$region0: #{tpu_custom_call.1}
  #allocation0 [shape = 'u32[]', space=smem, size = 0x4, offset = 0x4, fixed_abs, tag = 'smem constant byte address 0x4 - core index']
  #allocation1 [shape = 'u32[144,128]{1,0:T(1,128)}', space=vmem, size = 0x12000, scoped, tag = 'internal scratch']
  %s0 = inlined_call_operand.hbm [shape: f32[8,32], index: 0, kind: input, shape index: {}]
  %s1 = inlined_call_operand.hbm [shape: f32[32,768], index: 1, kind: input, shape index: {}]
  %s2 = inlined_call_operand.vmem [shape: f32[1,768], index: 2, kind: input, shape index: {}]
  %s3 = inlined_call_operand.hbm [shape: f32[512,256], index: 3, kind: input, shape index: {}]
  %s4 = inlined_call_operand.vmem [shape: f32[1,256], index: 4, kind: input, shape index: {}]
  %s5 = inlined_call_operand.hbm [shape: f32[256,128], index: 5, kind: input, shape index: {}]
  %s6 = inlined_call_operand.hbm [shape: f32[256,128], index: 6, kind: input, shape index: {}]
  %s7 = inlined_call_operand.vmem [shape: f32[1,128], index: 7, kind: input, shape index: {}]
  %s8 = inlined_call_operand.hbm [shape: f32[8,128], index: 8, kind: output, shape index: {}]
  %s9 = sld [smem:[#allocation0]]
  $region62: #{tpu_custom_call.1} parent=0
    _
  %s11 = ssub.s32 1, %s9
  %s12 = scalar_select 0, %s11, %s9
  $region1: #{tpu_custom_call.1} parent=0
    #allocation2 [shape = 'u8[4096]{0}', space=vmem, size = 0x1000, scoped, tag = 'input window, operand 0, single buffered']
    #allocation3 [shape = 's32[1]{0}', space=sflag, size = 0x4, scoped, tag = 'scoped memory for tpu_custom_call.1']
    #allocation4 [shape = 's32[1]{0}', space=sflag, size = 0x4, scoped, tag = 'scoped memory for tpu_custom_call.1']
    #allocation5 [shape = 'u8[98304]{0}', space=vmem, size = 0x18000, scoped, tag = 'input window, operand 1, single buffered']
    #allocation6 [shape = 's32[1]{0}', space=sflag, size = 0x4, scoped, tag = 'scoped memory for tpu_custom_call.1']
    #allocation7 [shape = 'u8[524288]{0}', space=vmem, size = 0x80000, scoped, tag = 'input window, operand 3, single buffered']
    #allocation8 [shape = 'u8[131072]{0}', space=vmem, size = 0x20000, scoped, tag = 'input window, operand 5, single buffered']
    #allocation9 [shape = 's32[1]{0}', space=sflag, size = 0x4, scoped, tag = 'scoped memory for tpu_custom_call.1']
    #allocation10 [shape = 'u8[131072]{0}', space=vmem, size = 0x20000, scoped, tag = 'input window, operand 6, single buffered']
    #allocation11 [shape = 'u8[4096]{0}', space=vmem, size = 0x1000, scoped, tag = 'output window, operand 0, single buffered']
    %13 = vsyncpa [#allocation3], 0
    %14 = vsyncpa [#allocation6], 0
    %15 = vsyncpa [#allocation9], 0
    %16 = vsyncpa [#allocation4], 0
    // Predicated region
    $region2: #{tpu_custom_call.1} parent=1 // pred_check
      _
    $region3: #{tpu_custom_call.1} parent=1 // pred_check_branch
      %18 = sbr.rel (0) target = $region5
    $region4: #{tpu_custom_call.1} parent=1 // pred_region
      %s20 = ssub.s32 128, 128
      %21 = vsyncadd [#allocation3], %s20
      %s23 = sshll.u32 [#allocation2], 4
      %s24 = int_to_ptr.vmem [resolvable:$true] %s23
      %26 = dma.hbm_to_vmem [thread:$0]  %s0, 128, %s24, [#allocation3]
    $region5: #{tpu_custom_call.1} parent=1 // pred_fallthru
      _
    // Predicated region
    $region6: #{tpu_custom_call.1} parent=1 // pred_check
      _
    $region7: #{tpu_custom_call.1} parent=1 // pred_check_branch
      %28 = sbr.rel (0) target = $region9
    $region8: #{tpu_custom_call.1} parent=1 // pred_region
      %s30 = ssub.s32 3072, 3072
      %31 = vsyncadd [#allocation6], %s30
      %s32 = sshll.u32 [#allocation5], 4
      %s33 = int_to_ptr.vmem [resolvable:$true] %s32
      %38 = dma.hbm_to_vmem [thread:$0]  %s1, 3072, %s33, [#allocation6], 768, 768, 48
    $region9: #{tpu_custom_call.1} parent=1 // pred_fallthru
      _
    // Predicated region
    $region10: #{tpu_custom_call.1} parent=1 // pred_check
      _
    $region11: #{tpu_custom_call.1} parent=1 // pred_check_branch
      %40 = sbr.rel (0) target = $region13
    $region12: #{tpu_custom_call.1} parent=1 // pred_region
      _
    $region13: #{tpu_custom_call.1} parent=1 // pred_fallthru
      _
    // Predicated region
    $region14: #{tpu_custom_call.1} parent=1 // pred_check
      _
    $region15: #{tpu_custom_call.1} parent=1 // pred_check_branch
      %42 = sbr.rel (0) target = $region17
    $region16: #{tpu_custom_call.1} parent=1 // pred_region
      %s44 = ssub.s32 16384, 16384
      %45 = vsyncadd [#allocation6], %s44
      %s46 = sshll.u32 [#allocation7], 4
      %s47 = int_to_ptr.vmem [resolvable:$true] %s46
      %52 = dma.hbm_to_vmem [thread:$0]  %s3, 16384, %s47, [#allocation6], 256, 256, 16
    $region17: #{tpu_custom_call.1} parent=1 // pred_fallthru
      _
    // Predicated region
    $region18: #{tpu_custom_call.1} parent=1 // pred_check
      _
    $region19: #{tpu_custom_call.1} parent=1 // pred_check_branch
      %54 = sbr.rel (0) target = $region21
    $region20: #{tpu_custom_call.1} parent=1 // pred_region
      _
    $region21: #{tpu_custom_call.1} parent=1 // pred_fallthru
      _
    // Predicated region
    $region22: #{tpu_custom_call.1} parent=1 // pred_check
      _
    $region23: #{tpu_custom_call.1} parent=1 // pred_check_branch
      %56 = sbr.rel (0) target = $region25
    $region24: #{tpu_custom_call.1} parent=1 // pred_region
      %s58 = ssub.s32 4096, 4096
      %59 = vsyncadd [#allocation9], %s58
      %s60 = sshll.u32 [#allocation8], 4
      %s61 = int_to_ptr.vmem [resolvable:$true] %s60
      %66 = dma.hbm_to_vmem [thread:$0]  %s5, 4096, %s61, [#allocation9], 128, 128, 8
    $region25: #{tpu_custom_call.1} parent=1 // pred_fallthru
      _
    // Predicated region
    $region26: #{tpu_custom_call.1} parent=1 // pred_check
      _
    $region27: #{tpu_custom_call.1} parent=1 // pred_check_branch
      %68 = sbr.rel (0) target = $region29
    $region28: #{tpu_custom_call.1} parent=1 // pred_region
      %s70 = ssub.s32 4096, 4096
      %71 = vsyncadd [#allocation9], %s70
      %s72 = sshll.u32 [#allocation10], 4
      %s73 = int_to_ptr.vmem [resolvable:$true] %s72
      %78 = dma.hbm_to_vmem [thread:$0]  %s6, 4096, %s73, [#allocation9], 128, 128, 8
    $region29: #{tpu_custom_call.1} parent=1 // pred_fallthru
      _
    // Predicated region
    $region30: #{tpu_custom_call.1} parent=1 // pred_check
      _
    $region31: #{tpu_custom_call.1} parent=1 // pred_check_branch
      %80 = sbr.rel (0) target = $region33
    $region32: #{tpu_custom_call.1} parent=1 // pred_region
      _
    $region33: #{tpu_custom_call.1} parent=1 // pred_fallthru
      _
    // Predicated region
    $region34: #{tpu_custom_call.1} parent=1 // pred_check
      _
    $region35: #{tpu_custom_call.1} parent=1 // pred_check_branch
      %82 = sbr.rel (0) target = $region37
    $region36: #{tpu_custom_call.1} parent=1 // pred_region
      %83 = dma.done [#allocation3], 128
    $region37: #{tpu_custom_call.1} parent=1 // pred_fallthru
      _
    // Predicated region
    $region38: #{tpu_custom_call.1} parent=1 // pred_check
      _
    $region39: #{tpu_custom_call.1} parent=1 // pred_check_branch
      %85 = sbr.rel (0) target = $region41
    $region40: #{tpu_custom_call.1} parent=1 // pred_region
      %86 = dma.done [#allocation6], 3072
    $region41: #{tpu_custom_call.1} parent=1 // pred_fallthru
      _
    // Predicated region
    $region42: #{tpu_custom_call.1} parent=1 // pred_check
      _
    $region43: #{tpu_custom_call.1} parent=1 // pred_check_branch
      %88 = sbr.rel (0) target = $region45
    $region44: #{tpu_custom_call.1} parent=1 // pred_region
      %89 = dma.done [#allocation6], 16384
    $region45: #{tpu_custom_call.1} parent=1 // pred_fallthru
      _
    // Predicated region
    $region46: #{tpu_custom_call.1} parent=1 // pred_check
      _
    $region47: #{tpu_custom_call.1} parent=1 // pred_check_branch
      %91 = sbr.rel (0) target = $region49
    $region48: #{tpu_custom_call.1} parent=1 // pred_region
      %92 = dma.done [#allocation9], 4096
    $region49: #{tpu_custom_call.1} parent=1 // pred_fallthru
      _
    // Predicated region
    $region50: #{tpu_custom_call.1} parent=1 // pred_check
      _
    $region51: #{tpu_custom_call.1} parent=1 // pred_check_branch
      %94 = sbr.rel (0) target = $region53
    $region52: #{tpu_custom_call.1} parent=1 // pred_region
      %95 = dma.done [#allocation9], 4096
    $region53: #{tpu_custom_call.1} parent=1 // pred_fallthru
      _
    %v96 = vld [vmem:[#allocation2] sm:$0xff]
    %v97 = vld [vmem:[#allocation5] sm:$0xff]
    %v98 = vld [vmem:[#allocation5 + $0x8] sm:$0xff]
    %v99 = vld [vmem:[#allocation5 + $0x10] sm:$0xff]
    %v100 = vld [vmem:[#allocation5 + $0x18] sm:$0xff]
    %v101 = vld [vmem:[#allocation5 + $0x20] sm:$0xff]
    %v102 = vld [vmem:[#allocation5 + $0x28] sm:$0xff]
    %v103 = vld [vmem:[#allocation5 + $0x30] sm:$0xff]
    %v104 = vld [vmem:[#allocation5 + $0x38] sm:$0xff]
    %v105 = vld [vmem:[#allocation5 + $0x40] sm:$0xff]
    %v106 = vld [vmem:[#allocation5 + $0x48] sm:$0xff]
    %v107 = vld [vmem:[#allocation5 + $0x50] sm:$0xff]
    %v108 = vld [vmem:[#allocation5 + $0x58] sm:$0xff]
    %v109 = vld [vmem:[#allocation5 + $0x60] sm:$0xff]
    %v110 = vld [vmem:[#allocation5 + $0x68] sm:$0xff]
    %v111 = vld [vmem:[#allocation5 + $0x70] sm:$0xff]
    %v112 = vld [vmem:[#allocation5 + $0x78] sm:$0xff]
    %v113 = vld [vmem:[#allocation5 + $0x80] sm:$0xff]
    %v114 = vld [vmem:[#allocation5 + $0x88] sm:$0xff]
    %v115 = vld [vmem:[#allocation5 + $0x90] sm:$0xff]
    %v116 = vld [vmem:[#allocation5 + $0x98] sm:$0xff]
    %v117 = vld [vmem:[#allocation5 + $0xa0] sm:$0xff]
    %v118 = vld [vmem:[#allocation5 + $0xa8] sm:$0xff]
    %v119 = vld [vmem:[#allocation5 + $0xb0] sm:$0xff]
    %v120 = vld [vmem:[#allocation5 + $0xb8] sm:$0xff]
    %v121 = vld [vmem:[%s2] sm:$0x3f]
    %v123 = vlaneseq
    %v124 = vshrl.u32 %v123, 7
    %v125 = vsub.s32 0, %v124
    %v126 = vrot.slane %v121, %v125
    %v127 = vlaneseq
    %v128 = vshrl.u32 %v127, 7
    %v129 = vsub.s32 1, %v128
    %v130 = vrot.slane %v121, %v129
    %v131 = vlaneseq
    %v132 = vshrl.u32 %v131, 7
    %v133 = vsub.s32 2, %v132
    %v134 = vrot.slane %v121, %v133
    %v135 = vlaneseq
    %v136 = vshrl.u32 %v135, 7
    %v137 = vsub.s32 3, %v136
    %v138 = vrot.slane %v121, %v137
    %v139 = vlaneseq
    %v140 = vshrl.u32 %v139, 7
    %v141 = vsub.s32 4, %v140
    %v142 = vrot.slane %v121, %v141
    %v143 = vlaneseq
    %v144 = vshrl.u32 %v143, 7
    %v145 = vsub.s32 5, %v144
    %v146 = vrot.slane %v121, %v145
    %vm153 = vcmask 261120
    %v155 = vsel %vm153, %v96, 0
    %157 = vmatprep.subr.mxu0 %v98
    %158 = vmatpush1.msra.mxu0 %v97
    %159 = vmatprep.subr.mxu0 %v104
    %160 = vmatpush1.msra.mxu0 %v103
    %161 = vmatprep.subr.mxu0 %v110
    %162 = vmatpush1.msra.mxu0 %v109
    %163 = vmatprep.subr.mxu0 %v116
    %164 = vmatpush1.msra.mxu0 %v115
    %165 = vmatprep.subr.mxu0 0.0
    %166 = vmatpush1.msra.mxu0 0.0
    %167 = vmatprep.subr.mxu0 0.0
    %168 = vmatpush1.msra.mxu0 0.0
    %169 = vmatprep.subr.mxu0 0.0
    %170 = vmatpush1.msra.mxu0 0.0
    %171 = vmatprep.subr.mxu0 0.0
    %172 = vmatpush1.msra.mxu0 0.0
    %173 = vmatprep.subr.mxu0 0.0
    %174 = vmatpush1.msra.mxu0 0.0
    %175 = vmatprep.subr.mxu0 0.0
    %176 = vmatpush1.msra.mxu0 0.0
    %177 = vmatprep.subr.mxu0 0.0
    %178 = vmatpush1.msra.mxu0 0.0
    %179 = vmatprep.subr.mxu0 0.0
    %180 = vmatpush1.msra.mxu0 0.0
    %181 = vmatprep.subr.mxu0 0.0
    %182 = vmatpush1.msra.mxu0 0.0
    %183 = vmatprep.subr.mxu0 0.0
    %184 = vmatpush1.msra.mxu0 0.0
    %185 = vmatprep.subr.mxu0 0.0
    %186 = vmatpush1.msra.mxu0 0.0
    %187 = vmatprep.subr.mxu0 0.0
    %188 = vmatpush1.msra.mxu0 0.0
    %189 = vmatprep.subr.mxu0 0.0
    %190 = vmatpush1.msra.mxu0 0.0
    %191 = vmatprep.subr.mxu0 0.0
    %192 = vmatpush1.msra.mxu0 0.0
    %193 = vmatprep.subr.mxu0 0.0
    %194 = vmatpush1.msra.mxu0 0.0
    %195 = vmatprep.subr.mxu0 0.0
    %196 = vmatpush1.msra.mxu0 0.0
    %197 = vmatprep.subr.mxu0 0.0
    %198 = vmatpush1.msra.mxu0 0.0
    %199 = vmatprep.subr.mxu0 0.0
    %200 = vmatpush1.msra.mxu0 0.0
    %201 = vmatprep.subr.mxu0 0.0
    %202 = vmatpush1.msra.mxu0 0.0
    %203 = vmatprep.subr.mxu0 0.0
    %204 = vmatpush1.msra.mxu0 0.0
    %205 = vmatprep.subr.mxu0 0.0
    %206 = vmatpush1.msra.mxu0 0.0
    %207 = vmatprep.subr.mxu0 0.0
    %208 = vmatpush1.msra.mxu0 0.0
    %209 = vmatprep.subr.mxu0 0.0
    %210 = vmatpush1.msra.mxu0 0.0
    %211 = vmatprep.subr.mxu0 0.0
    %212 = vmatpush1.msra.mxu0 0.0
    %213 = vmatprep.subr.mxu0 0.0
    %214 = vmatpush1.msra.mxu0 0.0
    %215 = vmatprep.subr.mxu0 0.0
    %216 = vmatpush1.msra.mxu0 0.0
    %217 = vmatprep.subr.mxu0 0.0
    %218 = vmatpush1.msra.mxu0 0.0
    %219 = vmatprep.subr.mxu0 0.0
    %220 = vmatpush1.msra.mxu0 0.0
    %221 = vmatprep.mubr.f32.mxu0 0.0
    %222 = vmatmul.mubr.f32.gmra.mrb[0].mxu0 %v155
    %v223 = vpop.f32.mrb[0].mxu0
    %v224 = vadd.f32 %v126, %v223
    %v225 = vpop.f32.mrb[0].mxu0
    %v226 = vadd.f32 %v130, %v225
    %227 = vdwg.mxu0
    %228 = vmatprep.subr.mxu0 %v100
    %229 = vmatpush1.msra.mxu0 %v99
    %230 = vmatprep.subr.mxu0 %v106
    %231 = vmatpush1.msra.mxu0 %v105
    %232 = vmatprep.subr.mxu0 %v112
    %233 = vmatpush1.msra.mxu0 %v111
    %234 = vmatprep.subr.mxu0 %v118
    %235 = vmatpush1.msra.mxu0 %v117
    %236 = vmatprep.subr.mxu0 0.0
    %237 = vmatpush1.msra.mxu0 0.0
    %238 = vmatprep.subr.mxu0 0.0
    %239 = vmatpush1.msra.mxu0 0.0
    %240 = vmatprep.subr.mxu0 0.0
    %241 = vmatpush1.msra.mxu0 0.0
    %242 = vmatprep.subr.mxu0 0.0
    %243 = vmatpush1.msra.mxu0 0.0
    %244 = vmatprep.subr.mxu0 0.0
    %245 = vmatpush1.msra.mxu0 0.0
    %246 = vmatprep.subr.mxu0 0.0
    %247 = vmatpush1.msra.mxu0 0.0
    %248 = vmatprep.subr.mxu0 0.0
    %249 = vmatpush1.msra.mxu0 0.0
    %250 = vmatprep.subr.mxu0 0.0
    %251 = vmatpush1.msra.mxu0 0.0
    %252 = vmatprep.subr.mxu0 0.0
    %253 = vmatpush1.msra.mxu0 0.0
    %254 = vmatprep.subr.mxu0 0.0
    %255 = vmatpush1.msra.mxu0 0.0
    %256 = vmatprep.subr.mxu0 0.0
    %257 = vmatpush1.msra.mxu0 0.0
    %258 = vmatprep.subr.mxu0 0.0
    %259 = vmatpush1.msra.mxu0 0.0
    %260 = vmatprep.subr.mxu0 0.0
    %261 = vmatpush1.msra.mxu0 0.0
    %262 = vmatprep.subr.mxu0 0.0
    %263 = vmatpush1.msra.mxu0 0.0
    %264 = vmatprep.subr.mxu0 0.0
    %265 = vmatpush1.msra.mxu0 0.0
    %266 = vmatprep.subr.mxu0 0.0
    %267 = vmatpush1.msra.mxu0 0.0
    %268 = vmatprep.subr.mxu0 0.0
    %269 = vmatpush1.msra.mxu0 0.0
    %270 = vmatprep.subr.mxu0 0.0
    %271 = vmatpush1.msra.mxu0 0.0
    %272 = vmatprep.subr.mxu0 0.0
    %273 = vmatpush1.msra.mxu0 0.0
    %274 = vmatprep.subr.mxu0 0.0
    %275 = vmatpush1.msra.mxu0 0.0
    %276 = vmatprep.subr.mxu0 0.0
    %277 = vmatpush1.msra.mxu0 0.0
    %278 = vmatprep.subr.mxu0 0.0
    %279 = vmatpush1.msra.mxu0 0.0
    %280 = vmatprep.subr.mxu0 0.0
    %281 = vmatpush1.msra.mxu0 0.0
    %282 = vmatprep.subr.mxu0 0.0
    %283 = vmatpush1.msra.mxu0 0.0
    %284 = vmatprep.subr.mxu0 0.0
    %285 = vmatpush1.msra.mxu0 0.0
    %286 = vmatprep.subr.mxu0 0.0
    %287 = vmatpush1.msra.mxu0 0.0
    %288 = vmatprep.subr.mxu0 0.0
    %289 = vmatpush1.msra.mxu0 0.0
    %290 = vmatprep.subr.mxu0 0.0
    %291 = vmatpush1.msra.mxu0 0.0
    %292 = vmatprep.mubr.f32.mxu0 0.0
    %293 = vmatmul.mubr.f32.gmra.mrb[0].mxu0 %v155
    %v294 = vpop.f32.mrb[0].mxu0
    %v295 = vadd.f32 %v134, %v294
    %v296 = vpop.f32.mrb[0].mxu0
    %v297 = vadd.f32 %v138, %v296
    %298 = vdwg.mxu0
    %299 = vmatprep.subr.mxu0 %v102
    %300 = vmatpush1.msra.mxu0 %v101
    %301 = vmatprep.subr.mxu0 %v108
    %302 = vmatpush1.msra.mxu0 %v107
    %303 = vmatprep.subr.mxu0 %v114
    %304 = vmatpush1.msra.mxu0 %v113
    %305 = vmatprep.subr.mxu0 %v120
    %306 = vmatpush1.msra.mxu0 %v119
    %307 = vmatprep.subr.mxu0 0.0
    %308 = vmatpush1.msra.mxu0 0.0
    %309 = vmatprep.subr.mxu0 0.0
    %310 = vmatpush1.msra.mxu0 0.0
    %311 = vmatprep.subr.mxu0 0.0
    %312 = vmatpush1.msra.mxu0 0.0
    %313 = vmatprep.subr.mxu0 0.0
    %314 = vmatpush1.msra.mxu0 0.0
    %315 = vmatprep.subr.mxu0 0.0
    %316 = vmatpush1.msra.mxu0 0.0
    %317 = vmatprep.subr.mxu0 0.0
    %318 = vmatpush1.msra.mxu0 0.0
    %319 = vmatprep.subr.mxu0 0.0
    %320 = vmatpush1.msra.mxu0 0.0
    %321 = vmatprep.subr.mxu0 0.0
    %322 = vmatpush1.msra.mxu0 0.0
    %323 = vmatprep.subr.mxu0 0.0
    %324 = vmatpush1.msra.mxu0 0.0
    %325 = vmatprep.subr.mxu0 0.0
    %326 = vmatpush1.msra.mxu0 0.0
    %327 = vmatprep.subr.mxu0 0.0
    %328 = vmatpush1.msra.mxu0 0.0
    %329 = vmatprep.subr.mxu0 0.0
    %330 = vmatpush1.msra.mxu0 0.0
    %331 = vmatprep.subr.mxu0 0.0
    %332 = vmatpush1.msra.mxu0 0.0
    %333 = vmatprep.subr.mxu0 0.0
    %334 = vmatpush1.msra.mxu0 0.0
    %335 = vmatprep.subr.mxu0 0.0
    %336 = vmatpush1.msra.mxu0 0.0
    %337 = vmatprep.subr.mxu0 0.0
    %338 = vmatpush1.msra.mxu0 0.0
    %339 = vmatprep.subr.mxu0 0.0
    %340 = vmatpush1.msra.mxu0 0.0
    %341 = vmatprep.subr.mxu0 0.0
    %342 = vmatpush1.msra.mxu0 0.0
    %343 = vmatprep.subr.mxu0 0.0
    %344 = vmatpush1.msra.mxu0 0.0
    %345 = vmatprep.subr.mxu0 0.0
    %346 = vmatpush1.msra.mxu0 0.0
    %347 = vmatprep.subr.mxu0 0.0
    %348 = vmatpush1.msra.mxu0 0.0
    %349 = vmatprep.subr.mxu0 0.0
    %350 = vmatpush1.msra.mxu0 0.0
    %351 = vmatprep.subr.mxu0 0.0
    %352 = vmatpush1.msra.mxu0 0.0
    %353 = vmatprep.subr.mxu0 0.0
    %354 = vmatpush1.msra.mxu0 0.0
    %355 = vmatprep.subr.mxu0 0.0
    %356 = vmatpush1.msra.mxu0 0.0
    %357 = vmatprep.subr.mxu0 0.0
    %358 = vmatpush1.msra.mxu0 0.0
    %359 = vmatprep.subr.mxu0 0.0
    %360 = vmatpush1.msra.mxu0 0.0
    %361 = vmatprep.subr.mxu0 0.0
    %362 = vmatpush1.msra.mxu0 0.0
    %363 = vmatprep.mubr.f32.mxu0 0.0
    %364 = vmatmul.mubr.f32.gmra.mrb[0].mxu0 %v155
    %v365 = vpop.f32.mrb[0].mxu0
    %v366 = vadd.f32 %v142, %v365
    %v367 = vpop.f32.mrb[0].mxu0
    %v368 = vadd.f32 %v146, %v367
    %369 = vdwg.mxu0
    %v370 = vmul.f32 %v224, 0.5
    %v371 = vmul.f32 %v226, 0.5
    %v372 = vmul.f32 %v295, 0.5
    %v373 = vmul.f32 %v297, 0.5
    %v374 = vmul.f32 %v366, 0.5
    %v375 = vmul.f32 %v368, 0.5
    %v376 = vmul.f32 %v224, 0.044715
    %v377 = vmul.f32 %v226, 0.044715
    %v378 = vmul.f32 %v295, 0.044715
    %v379 = vmul.f32 %v297, 0.044715
    %v380 = vmul.f32 %v366, 0.044715
    %v381 = vmul.f32 %v368, 0.044715
    %v382 = vmul.f32 %v376, %v224
    %v383 = vmul.f32 %v377, %v226
    %v384 = vmul.f32 %v378, %v295
    %v385 = vmul.f32 %v379, %v297
    %v386 = vmul.f32 %v380, %v366
    %v387 = vmul.f32 %v381, %v368
    %v388 = vmul.f32 %v382, %v224
    %v389 = vmul.f32 %v383, %v226
    %v390 = vmul.f32 %v384, %v295
    %v391 = vmul.f32 %v385, %v297
    %v392 = vmul.f32 %v386, %v366
    %v393 = vmul.f32 %v387, %v368
    %v394 = vadd.f32 %v224, %v388
    %v395 = vadd.f32 %v226, %v389
    %v396 = vadd.f32 %v295, %v390
    %v397 = vadd.f32 %v297, %v391
    %v398 = vadd.f32 %v366, %v392
    %v399 = vadd.f32 %v368, %v393
    %v400 = vmul.f32 %v394, 0.7978846
    %v401 = vmul.f32 %v395, 0.7978846
    %v402 = vmul.f32 %v396, 0.7978846
    %v403 = vmul.f32 %v397, 0.7978846
    %v404 = vmul.f32 %v398, 0.7978846
    %v405 = vmul.f32 %v399, 0.7978846
    %v406 = vtanh.pop %v400
    %v407 = vtanh.pop %v401
    %v408 = vtanh.pop %v402
    %v409 = vtanh.pop %v403
    %v410 = vtanh.pop %v404
    %v411 = vtanh.pop %v405
    %v412 = vadd.f32 %v406, 1.0
    %v413 = vadd.f32 %v407, 1.0
    %v414 = vadd.f32 %v408, 1.0
    %v415 = vadd.f32 %v409, 1.0
    %v416 = vadd.f32 %v410, 1.0
    %v417 = vadd.f32 %v411, 1.0
    %v418 = vmul.f32 %v370, %v412
    %v419 = vmul.f32 %v371, %v413
    %v420 = vmul.f32 %v372, %v414
    %v421 = vmul.f32 %v373, %v415
    %v422 = vmul.f32 %v374, %v416
    %v423 = vmul.f32 %v375, %v417
    %v424 = vld [vmem:[#allocation7] sm:$0xff]
    %v425 = vld [vmem:[#allocation7 + $0x8] sm:$0xff]
    %v426 = vld [vmem:[#allocation7 + $0x10] sm:$0xff]
    %v427 = vld [vmem:[#allocation7 + $0x18] sm:$0xff]
    %v428 = vld [vmem:[#allocation7 + $0x20] sm:$0xff]
    %v429 = vld [vmem:[#allocation7 + $0x28] sm:$0xff]
    %v430 = vld [vmem:[#allocation7 + $0x30] sm:$0xff]
    %v431 = vld [vmem:[#allocation7 + $0x38] sm:$0xff]
    %v432 = vld [vmem:[#allocation7 + $0x40] sm:$0xff]
    %v433 = vld [vmem:[#allocation7 + $0x48] sm:$0xff]
    %v434 = vld [vmem:[#allocation7 + $0x50] sm:$0xff]
    %v435 = vld [vmem:[#allocation7 + $0x58] sm:$0xff]
    %v436 = vld [vmem:[#allocation7 + $0x60] sm:$0xff]
    %v437 = vld [vmem:[#allocation7 + $0x68] sm:$0xff]
    %v438 = vld [vmem:[#allocation7 + $0x70] sm:$0xff]
    %v439 = vld [vmem:[#allocation7 + $0x78] sm:$0xff]
    %v440 = vld [vmem:[#allocation7 + $0x80] sm:$0xff]
    %v441 = vld [vmem:[#allocation7 + $0x88] sm:$0xff]
    %v442 = vld [vmem:[#allocation7 + $0x90] sm:$0xff]
    %v443 = vld [vmem:[#allocation7 + $0x98] sm:$0xff]
    %v444 = vld [vmem:[#allocation7 + $0xa0] sm:$0xff]
    %v445 = vld [vmem:[#allocation7 + $0xa8] sm:$0xff]
    %v446 = vld [vmem:[#allocation7 + $0xb0] sm:$0xff]
    %v447 = vld [vmem:[#allocation7 + $0xb8] sm:$0xff]
    %v448 = vld [vmem:[#allocation7 + $0xc0] sm:$0xff]
    %v449 = vld [vmem:[#allocation7 + $0xc8] sm:$0xff]
    %v450 = vld [vmem:[#allocation7 + $0xd0] sm:$0xff]
    %v451 = vld [vmem:[#allocation7 + $0xd8] sm:$0xff]
    %v452 = vld [vmem:[#allocation7 + $0xe0] sm:$0xff]
    %v453 = vld [vmem:[#allocation7 + $0xe8] sm:$0xff]
    %v454 = vld [vmem:[#allocation7 + $0xf0] sm:$0xff]
    %v455 = vld [vmem:[#allocation7 + $0xf8] sm:$0xff]
    %v456 = vld [vmem:[#allocation7 + $0x100] sm:$0xff]
    %v457 = vld [vmem:[#allocation7 + $0x108] sm:$0xff]
    %v458 = vld [vmem:[#allocation7 + $0x110] sm:$0xff]
    %v459 = vld [vmem:[#allocation7 + $0x118] sm:$0xff]
    %v460 = vld [vmem:[#allocation7 + $0x120] sm:$0xff]
    %v461 = vld [vmem:[#allocation7 + $0x128] sm:$0xff]
    %v462 = vld [vmem:[#allocation7 + $0x130] sm:$0xff]
    %v463 = vld [vmem:[#allocation7 + $0x138] sm:$0xff]
    %v464 = vld [vmem:[#allocation7 + $0x140] sm:$0xff]
    %v465 = vld [vmem:[#allocation7 + $0x148] sm:$0xff]
    %v466 = vld [vmem:[#allocation7 + $0x150] sm:$0xff]
    %v467 = vld [vmem:[#allocation7 + $0x158] sm:$0xff]
    %v468 = vld [vmem:[#allocation7 + $0x160] sm:$0xff]
    %v469 = vld [vmem:[#allocation7 + $0x168] sm:$0xff]
    %v470 = vld [vmem:[#allocation7 + $0x170] sm:$0xff]
    %v471 = vld [vmem:[#allocation7 + $0x178] sm:$0xff]
    %v472 = vld [vmem:[#allocation7 + $0x180] sm:$0xff]
    %v473 = vld [vmem:[#allocation7 + $0x188] sm:$0xff]
    %v474 = vld [vmem:[#allocation7 + $0x190] sm:$0xff]
    %v475 = vld [vmem:[#allocation7 + $0x198] sm:$0xff]
    %v476 = vld [vmem:[#allocation7 + $0x1a0] sm:$0xff]
    %v477 = vld [vmem:[#allocation7 + $0x1a8] sm:$0xff]
    %v478 = vld [vmem:[#allocation7 + $0x1b0] sm:$0xff]
    %v479 = vld [vmem:[#allocation7 + $0x1b8] sm:$0xff]
    %v480 = vld [vmem:[#allocation7 + $0x1c0] sm:$0xff]
    %v481 = vld [vmem:[#allocation7 + $0x1c8] sm:$0xff]
    %v482 = vld [vmem:[#allocation7 + $0x1d0] sm:$0xff]
    %v483 = vld [vmem:[#allocation7 + $0x1d8] sm:$0xff]
    %v484 = vld [vmem:[#allocation7 + $0x1e0] sm:$0xff]
    %v485 = vld [vmem:[#allocation7 + $0x1e8] sm:$0xff]
    %v486 = vld [vmem:[#allocation7 + $0x1f0] sm:$0xff]
    %v487 = vld [vmem:[#allocation7 + $0x1f8] sm:$0xff]
    %v488 = vld [vmem:[#allocation7 + $0x200] sm:$0xff]
    %v489 = vld [vmem:[#allocation7 + $0x208] sm:$0xff]
    %v490 = vld [vmem:[#allocation7 + $0x210] sm:$0xff]
    %v491 = vld [vmem:[#allocation7 + $0x218] sm:$0xff]
    %v492 = vld [vmem:[#allocation7 + $0x220] sm:$0xff]
    %v493 = vld [vmem:[#allocation7 + $0x228] sm:$0xff]
    %v494 = vld [vmem:[#allocation7 + $0x230] sm:$0xff]
    %v495 = vld [vmem:[#allocation7 + $0x238] sm:$0xff]
    %v496 = vld [vmem:[#allocation7 + $0x240] sm:$0xff]
    %v497 = vld [vmem:[#allocation7 + $0x248] sm:$0xff]
    %v498 = vld [vmem:[#allocation7 + $0x250] sm:$0xff]
    %v499 = vld [vmem:[#allocation7 + $0x258] sm:$0xff]
    %v500 = vld [vmem:[#allocation7 + $0x260] sm:$0xff]
    %v501 = vld [vmem:[#allocation7 + $0x268] sm:$0xff]
    %v502 = vld [vmem:[#allocation7 + $0x270] sm:$0xff]
    %v503 = vld [vmem:[#allocation7 + $0x278] sm:$0xff]
    %v504 = vld [vmem:[#allocation7 + $0x280] sm:$0xff]
    %v505 = vld [vmem:[#allocation7 + $0x288] sm:$0xff]
    %v506 = vld [vmem:[#allocation7 + $0x290] sm:$0xff]
    %v507 = vld [vmem:[#allocation7 + $0x298] sm:$0xff]
    %v508 = vld [vmem:[#allocation7 + $0x2a0] sm:$0xff]
    %v509 = vld [vmem:[#allocation7 + $0x2a8] sm:$0xff]
    %v510 = vld [vmem:[#allocation7 + $0x2b0] sm:$0xff]
    %v511 = vld [vmem:[#allocation7 + $0x2b8] sm:$0xff]
    %v512 = vld [vmem:[#allocation7 + $0x2c0] sm:$0xff]
    %v513 = vld [vmem:[#allocation7 + $0x2c8] sm:$0xff]
    %v514 = vld [vmem:[#allocation7 + $0x2d0] sm:$0xff]
    %v515 = vld [vmem:[#allocation7 + $0x2d8] sm:$0xff]
    %v516 = vld [vmem:[#allocation7 + $0x2e0] sm:$0xff]
    %v517 = vld [vmem:[#allocation7 + $0x2e8] sm:$0xff]
    %v518 = vld [vmem:[#allocation7 + $0x2f0] sm:$0xff]
    %v519 = vld [vmem:[#allocation7 + $0x2f8] sm:$0xff]
    %v520 = vld [vmem:[#allocation7 + $0x300] sm:$0xff]
    %v521 = vld [vmem:[#allocation7 + $0x308] sm:$0xff]
    %v522 = vld [vmem:[#allocation7 + $0x310] sm:$0xff]
    %v523 = vld [vmem:[#allocation7 + $0x318] sm:$0xff]
    %v524 = vld [vmem:[#allocation7 + $0x320] sm:$0xff]
    %v525 = vld [vmem:[#allocation7 + $0x328] sm:$0xff]
    %v526 = vld [vmem:[#allocation7 + $0x330] sm:$0xff]
    %v527 = vld [vmem:[#allocation7 + $0x338] sm:$0xff]
    %v528 = vld [vmem:[#allocation7 + $0x340] sm:$0xff]
    %v529 = vld [vmem:[#allocation7 + $0x348] sm:$0xff]
    %v530 = vld [vmem:[#allocation7 + $0x350] sm:$0xff]
    %v531 = vld [vmem:[#allocation7 + $0x358] sm:$0xff]
    %v532 = vld [vmem:[#allocation7 + $0x360] sm:$0xff]
    %v533 = vld [vmem:[#allocation7 + $0x368] sm:$0xff]
    %v534 = vld [vmem:[#allocation7 + $0x370] sm:$0xff]
    %v535 = vld [vmem:[#allocation7 + $0x378] sm:$0xff]
    %v536 = vld [vmem:[#allocation7 + $0x380] sm:$0xff]
    %v537 = vld [vmem:[#allocation7 + $0x388] sm:$0xff]
    %v538 = vld [vmem:[#allocation7 + $0x390] sm:$0xff]
    %v539 = vld [vmem:[#allocation7 + $0x398] sm:$0xff]
    %v540 = vld [vmem:[#allocation7 + $0x3a0] sm:$0xff]
    %v541 = vld [vmem:[#allocation7 + $0x3a8] sm:$0xff]
    %v542 = vld [vmem:[#allocation7 + $0x3b0] sm:$0xff]
    %v543 = vld [vmem:[#allocation7 + $0x3b8] sm:$0xff]
    %v544 = vld [vmem:[#allocation7 + $0x3c0] sm:$0xff]
    %v545 = vld [vmem:[#allocation7 + $0x3c8] sm:$0xff]
    %v546 = vld [vmem:[#allocation7 + $0x3d0] sm:$0xff]
    %v547 = vld [vmem:[#allocation7 + $0x3d8] sm:$0xff]
    %v548 = vld [vmem:[#allocation7 + $0x3e0] sm:$0xff]
    %v549 = vld [vmem:[#allocation7 + $0x3e8] sm:$0xff]
    %v550 = vld [vmem:[#allocation7 + $0x3f0] sm:$0xff]
    %v551 = vld [vmem:[#allocation7 + $0x3f8] sm:$0xff]
    %v552 = vld [vmem:[%s4] sm:$0x3]
    %v554 = vlaneseq
    %v555 = vshrl.u32 %v554, 7
    %v556 = vsub.s32 0, %v555
    %v557 = vrot.slane %v552, %v556
    %v558 = vlaneseq
    %v559 = vshrl.u32 %v558, 7
    %v560 = vsub.s32 1, %v559
    %v561 = vrot.slane %v552, %v560
    %564 = vmatprep.subr.mxu0 %v425
    %565 = vmatpush1.msra.mxu0 %v424
    %566 = vmatprep.subr.mxu0 %v427
    %567 = vmatpush1.msra.mxu0 %v426
    %568 = vmatprep.subr.mxu0 %v429
    %569 = vmatpush1.msra.mxu0 %v428
    %570 = vmatprep.subr.mxu0 %v431
    %571 = vmatpush1.msra.mxu0 %v430
    %572 = vmatprep.subr.mxu0 %v433
    %573 = vmatpush1.msra.mxu0 %v432
    %574 = vmatprep.subr.mxu0 %v435
    %575 = vmatpush1.msra.mxu0 %v434
    %576 = vmatprep.subr.mxu0 %v437
    %577 = vmatpush1.msra.mxu0 %v436
    %578 = vmatprep.subr.mxu0 %v439
    %579 = vmatpush1.msra.mxu0 %v438
    %580 = vmatprep.subr.mxu0 %v441
    %581 = vmatpush1.msra.mxu0 %v440
    %582 = vmatprep.subr.mxu0 %v443
    %583 = vmatpush1.msra.mxu0 %v442
    %584 = vmatprep.subr.mxu0 %v445
    %585 = vmatpush1.msra.mxu0 %v444
    %586 = vmatprep.subr.mxu0 %v447
    %587 = vmatpush1.msra.mxu0 %v446
    %588 = vmatprep.subr.mxu0 %v449
    %589 = vmatpush1.msra.mxu0 %v448
    %590 = vmatprep.subr.mxu0 %v451
    %591 = vmatpush1.msra.mxu0 %v450
    %592 = vmatprep.subr.mxu0 %v453
    %593 = vmatpush1.msra.mxu0 %v452
    %594 = vmatprep.subr.mxu0 %v455
    %595 = vmatpush1.msra.mxu0 %v454
    %596 = vmatprep.subr.mxu0 %v457
    %597 = vmatpush1.msra.mxu0 %v456
    %598 = vmatprep.subr.mxu0 %v459
    %599 = vmatpush1.msra.mxu0 %v458
    %600 = vmatprep.subr.mxu0 %v461
    %601 = vmatpush1.msra.mxu0 %v460
    %602 = vmatprep.subr.mxu0 %v463
    %603 = vmatpush1.msra.mxu0 %v462
    %604 = vmatprep.subr.mxu0 %v465
    %605 = vmatpush1.msra.mxu0 %v464
    %606 = vmatprep.subr.mxu0 %v467
    %607 = vmatpush1.msra.mxu0 %v466
    %608 = vmatprep.subr.mxu0 %v469
    %609 = vmatpush1.msra.mxu0 %v468
    %610 = vmatprep.subr.mxu0 %v471
    %611 = vmatpush1.msra.mxu0 %v470
    %612 = vmatprep.subr.mxu0 %v473
    %613 = vmatpush1.msra.mxu0 %v472
    %614 = vmatprep.subr.mxu0 %v475
    %615 = vmatpush1.msra.mxu0 %v474
    %616 = vmatprep.subr.mxu0 %v477
    %617 = vmatpush1.msra.mxu0 %v476
    %618 = vmatprep.subr.mxu0 %v479
    %619 = vmatpush1.msra.mxu0 %v478
    %620 = vmatprep.subr.mxu0 %v481
    %621 = vmatpush1.msra.mxu0 %v480
    %622 = vmatprep.subr.mxu0 %v483
    %623 = vmatpush1.msra.mxu0 %v482
    %624 = vmatprep.subr.mxu0 %v485
    %625 = vmatpush1.msra.mxu0 %v484
    %626 = vmatprep.subr.mxu0 %v487
    %627 = vmatpush1.msra.mxu0 %v486
    %628 = vmatprep.mubr.f32.mxu0 %v419
    %629 = vmatmul.mubr.f32.gmra.mrb[0].mxu0 %v418
    %v630 = vpop.f32.mrb[0].mxu0
    %v631 = vadd.f32 %v557, %v630
    %v632 = vpop.f32.mrb[0].mxu0
    %v633 = vadd.f32 %v561, %v632
    %634 = vdwg.mxu0
    %635 = vmatprep.subr.mxu0 %v489
    %636 = vmatpush1.msra.mxu0 %v488
    %637 = vmatprep.subr.mxu0 %v491
    %638 = vmatpush1.msra.mxu0 %v490
    %639 = vmatprep.subr.mxu0 %v493
    %640 = vmatpush1.msra.mxu0 %v492
    %641 = vmatprep.subr.mxu0 %v495
    %642 = vmatpush1.msra.mxu0 %v494
    %643 = vmatprep.subr.mxu0 %v497
    %644 = vmatpush1.msra.mxu0 %v496
    %645 = vmatprep.subr.mxu0 %v499
    %646 = vmatpush1.msra.mxu0 %v498
    %647 = vmatprep.subr.mxu0 %v501
    %648 = vmatpush1.msra.mxu0 %v500
    %649 = vmatprep.subr.mxu0 %v503
    %650 = vmatpush1.msra.mxu0 %v502
    %651 = vmatprep.subr.mxu0 %v505
    %652 = vmatpush1.msra.mxu0 %v504
    %653 = vmatprep.subr.mxu0 %v507
    %654 = vmatpush1.msra.mxu0 %v506
    %655 = vmatprep.subr.mxu0 %v509
    %656 = vmatpush1.msra.mxu0 %v508
    %657 = vmatprep.subr.mxu0 %v511
    %658 = vmatpush1.msra.mxu0 %v510
    %659 = vmatprep.subr.mxu0 %v513
    %660 = vmatpush1.msra.mxu0 %v512
    %661 = vmatprep.subr.mxu0 %v515
    %662 = vmatpush1.msra.mxu0 %v514
    %663 = vmatprep.subr.mxu0 %v517
    %664 = vmatpush1.msra.mxu0 %v516
    %665 = vmatprep.subr.mxu0 %v519
    %666 = vmatpush1.msra.mxu0 %v518
    %667 = vmatprep.subr.mxu0 %v521
    %668 = vmatpush1.msra.mxu0 %v520
    %669 = vmatprep.subr.mxu0 %v523
    %670 = vmatpush1.msra.mxu0 %v522
    %671 = vmatprep.subr.mxu0 %v525
    %672 = vmatpush1.msra.mxu0 %v524
    %673 = vmatprep.subr.mxu0 %v527
    %674 = vmatpush1.msra.mxu0 %v526
    %675 = vmatprep.subr.mxu0 %v529
    %676 = vmatpush1.msra.mxu0 %v528
    %677 = vmatprep.subr.mxu0 %v531
    %678 = vmatpush1.msra.mxu0 %v530
    %679 = vmatprep.subr.mxu0 %v533
    %680 = vmatpush1.msra.mxu0 %v532
    %681 = vmatprep.subr.mxu0 %v535
    %682 = vmatpush1.msra.mxu0 %v534
    %683 = vmatprep.subr.mxu0 %v537
    %684 = vmatpush1.msra.mxu0 %v536
    %685 = vmatprep.subr.mxu0 %v539
    %686 = vmatpush1.msra.mxu0 %v538
    %687 = vmatprep.subr.mxu0 %v541
    %688 = vmatpush1.msra.mxu0 %v540
    %689 = vmatprep.subr.mxu0 %v543
    %690 = vmatpush1.msra.mxu0 %v542
    %691 = vmatprep.subr.mxu0 %v545
    %692 = vmatpush1.msra.mxu0 %v544
    %693 = vmatprep.subr.mxu0 %v547
    %694 = vmatpush1.msra.mxu0 %v546
    %695 = vmatprep.subr.mxu0 %v549
    %696 = vmatpush1.msra.mxu0 %v548
    %697 = vmatprep.subr.mxu0 %v551
    %698 = vmatpush1.msra.mxu0 %v550
    %699 = vmatprep.mubr.f32.mxu0 %v421
    %700 = vmatmul.mubr.f32.gmra.mrb[0].mxu0 %v420
    %v701 = vpop.f32.mrb[0].mxu0
    %v702 = vadd.f32 %v631, %v701
    %v703 = vpop.f32.mrb[0].mxu0
    %v704 = vadd.f32 %v633, %v703
    %705 = vdwg.mxu0
    %v706 = vmul.f32 %v702, 0.5
    %v707 = vmul.f32 %v704, 0.5
    %v708 = vmul.f32 %v702, 0.044715
    %v709 = vmul.f32 %v704, 0.044715
    %v710 = vmul.f32 %v708, %v702
    %v711 = vmul.f32 %v709, %v704
    %v712 = vmul.f32 %v710, %v702
    %v713 = vmul.f32 %v711, %v704
    %v714 = vadd.f32 %v702, %v712
    %v715 = vadd.f32 %v704, %v713
    %v716 = vmul.f32 %v714, 0.7978846
    %v717 = vmul.f32 %v715, 0.7978846
    %v718 = vtanh.pop %v716
    %v719 = vtanh.pop %v717
    %v720 = vadd.f32 %v718, 1.0
    %v721 = vadd.f32 %v719, 1.0
    %v722 = vmul.f32 %v706, %v720
    %v723 = vmul.f32 %v707, %v721
    %v724 = vld [vmem:[#allocation8] sm:$0xff]
    %v725 = vld [vmem:[#allocation8 + $0x8] sm:$0xff]
    %v726 = vld [vmem:[#allocation8 + $0x10] sm:$0xff]
    %v727 = vld [vmem:[#allocation8 + $0x18] sm:$0xff]
    %v728 = vld [vmem:[#allocation8 + $0x20] sm:$0xff]
    %v729 = vld [vmem:[#allocation8 + $0x28] sm:$0xff]
    %v730 = vld [vmem:[#allocation8 + $0x30] sm:$0xff]
    %v731 = vld [vmem:[#allocation8 + $0x38] sm:$0xff]
    %v732 = vld [vmem:[#allocation8 + $0x40] sm:$0xff]
    %v733 = vld [vmem:[#allocation8 + $0x48] sm:$0xff]
    %v734 = vld [vmem:[#allocation8 + $0x50] sm:$0xff]
    %v735 = vld [vmem:[#allocation8 + $0x58] sm:$0xff]
    %v736 = vld [vmem:[#allocation8 + $0x60] sm:$0xff]
    %v737 = vld [vmem:[#allocation8 + $0x68] sm:$0xff]
    %v738 = vld [vmem:[#allocation8 + $0x70] sm:$0xff]
    %v739 = vld [vmem:[#allocation8 + $0x78] sm:$0xff]
    %v740 = vld [vmem:[#allocation8 + $0x80] sm:$0xff]
    %v741 = vld [vmem:[#allocation8 + $0x88] sm:$0xff]
    %v742 = vld [vmem:[#allocation8 + $0x90] sm:$0xff]
    %v743 = vld [vmem:[#allocation8 + $0x98] sm:$0xff]
    %v744 = vld [vmem:[#allocation8 + $0xa0] sm:$0xff]
    %v745 = vld [vmem:[#allocation8 + $0xa8] sm:$0xff]
    %v746 = vld [vmem:[#allocation8 + $0xb0] sm:$0xff]
    %v747 = vld [vmem:[#allocation8 + $0xb8] sm:$0xff]
    %v748 = vld [vmem:[#allocation8 + $0xc0] sm:$0xff]
    %v749 = vld [vmem:[#allocation8 + $0xc8] sm:$0xff]
    %v750 = vld [vmem:[#allocation8 + $0xd0] sm:$0xff]
    %v751 = vld [vmem:[#allocation8 + $0xd8] sm:$0xff]
    %v752 = vld [vmem:[#allocation8 + $0xe0] sm:$0xff]
    %v753 = vld [vmem:[#allocation8 + $0xe8] sm:$0xff]
    %v754 = vld [vmem:[#allocation8 + $0xf0] sm:$0xff]
    %v755 = vld [vmem:[#allocation8 + $0xf8] sm:$0xff]
    %v756 = vld [vmem:[#allocation10] sm:$0xff]
    %v757 = vld [vmem:[#allocation10 + $0x8] sm:$0xff]
    %v758 = vld [vmem:[#allocation10 + $0x10] sm:$0xff]
    %v759 = vld [vmem:[#allocation10 + $0x18] sm:$0xff]
    %v760 = vld [vmem:[#allocation10 + $0x20] sm:$0xff]
    %v761 = vld [vmem:[#allocation10 + $0x28] sm:$0xff]
    %v762 = vld [vmem:[#allocation10 + $0x30] sm:$0xff]
    %v763 = vld [vmem:[#allocation10 + $0x38] sm:$0xff]
    %v764 = vld [vmem:[#allocation10 + $0x40] sm:$0xff]
    %v765 = vld [vmem:[#allocation10 + $0x48] sm:$0xff]
    %v766 = vld [vmem:[#allocation10 + $0x50] sm:$0xff]
    %v767 = vld [vmem:[#allocation10 + $0x58] sm:$0xff]
    %v768 = vld [vmem:[#allocation10 + $0x60] sm:$0xff]
    %v769 = vld [vmem:[#allocation10 + $0x68] sm:$0xff]
    %v770 = vld [vmem:[#allocation10 + $0x70] sm:$0xff]
    %v771 = vld [vmem:[#allocation10 + $0x78] sm:$0xff]
    %v772 = vld [vmem:[#allocation10 + $0x80] sm:$0xff]
    %v773 = vld [vmem:[#allocation10 + $0x88] sm:$0xff]
    %v774 = vld [vmem:[#allocation10 + $0x90] sm:$0xff]
    %v775 = vld [vmem:[#allocation10 + $0x98] sm:$0xff]
    %v776 = vld [vmem:[#allocation10 + $0xa0] sm:$0xff]
    %v777 = vld [vmem:[#allocation10 + $0xa8] sm:$0xff]
    %v778 = vld [vmem:[#allocation10 + $0xb0] sm:$0xff]
    %v779 = vld [vmem:[#allocation10 + $0xb8] sm:$0xff]
    %v780 = vld [vmem:[#allocation10 + $0xc0] sm:$0xff]
    %v781 = vld [vmem:[#allocation10 + $0xc8] sm:$0xff]
    %v782 = vld [vmem:[#allocation10 + $0xd0] sm:$0xff]
    %v783 = vld [vmem:[#allocation10 + $0xd8] sm:$0xff]
    %v784 = vld [vmem:[#allocation10 + $0xe0] sm:$0xff]
    %v785 = vld [vmem:[#allocation10 + $0xe8] sm:$0xff]
    %v786 = vld [vmem:[#allocation10 + $0xf0] sm:$0xff]
    %v787 = vld [vmem:[#allocation10 + $0xf8] sm:$0xff]
    %788 = vmatprep.subr.mxu0 0.0
    %789 = vmatpush1.msra.mxu0 %v756
    %790 = vmatprep.subr.mxu0 0.0
    %791 = vmatpush1.msra.mxu0 %v757
    %792 = vmatprep.subr.mxu0 0.0
    %793 = vmatpush1.msra.mxu0 %v758
    %794 = vmatprep.subr.mxu0 0.0
    %795 = vmatpush1.msra.mxu0 %v759
    %796 = vmatprep.subr.mxu0 0.0
    %797 = vmatpush1.msra.mxu0 %v760
    %798 = vmatprep.subr.mxu0 0.0
    %799 = vmatpush1.msra.mxu0 %v761
    %800 = vmatprep.subr.mxu0 0.0
    %801 = vmatpush1.msra.mxu0 %v762
    %802 = vmatprep.subr.mxu0 0.0
    %803 = vmatpush1.msra.mxu0 %v763
    %804 = vmatprep.subr.mxu0 0.0
    %805 = vmatpush1.msra.mxu0 %v764
    %806 = vmatprep.subr.mxu0 0.0
    %807 = vmatpush1.msra.mxu0 %v765
    %808 = vmatprep.subr.mxu0 0.0
    %809 = vmatpush1.msra.mxu0 %v766
    %810 = vmatprep.subr.mxu0 0.0
    %811 = vmatpush1.msra.mxu0 %v767
    %812 = vmatprep.subr.mxu0 0.0
    %813 = vmatpush1.msra.mxu0 %v768
    %814 = vmatprep.subr.mxu0 0.0
    %815 = vmatpush1.msra.mxu0 %v769
    %816 = vmatprep.subr.mxu0 0.0
    %817 = vmatpush1.msra.mxu0 %v770
    %818 = vmatprep.subr.mxu0 0.0
    %819 = vmatpush1.msra.mxu0 %v771
    %820 = vmatprep.subr.mxu0 0.0
    %821 = vmatpush1.msra.mxu0 %v772
    %822 = vmatprep.subr.mxu0 0.0
    %823 = vmatpush1.msra.mxu0 %v773
    %824 = vmatprep.subr.mxu0 0.0
    %825 = vmatpush1.msra.mxu0 %v774
    %826 = vmatprep.subr.mxu0 0.0
    %827 = vmatpush1.msra.mxu0 %v775
    %828 = vmatprep.subr.mxu0 0.0
    %829 = vmatpush1.msra.mxu0 %v776
    %830 = vmatprep.subr.mxu0 0.0
    %831 = vmatpush1.msra.mxu0 %v777
    %832 = vmatprep.subr.mxu0 0.0
    %833 = vmatpush1.msra.mxu0 %v778
    %834 = vmatprep.subr.mxu0 0.0
    %835 = vmatpush1.msra.mxu0 %v779
    %836 = vmatprep.subr.mxu0 0.0
    %837 = vmatpush1.msra.mxu0 %v780
    %838 = vmatprep.subr.mxu0 0.0
    %839 = vmatpush1.msra.mxu0 %v781
    %840 = vmatprep.subr.mxu0 0.0
    %841 = vmatpush1.msra.mxu0 %v782
    %842 = vmatprep.subr.mxu0 0.0
    %843 = vmatpush1.msra.mxu0 %v783
    %844 = vmatprep.subr.mxu0 0.0
    %845 = vmatpush1.msra.mxu0 %v784
    %846 = vmatprep.subr.mxu0 0.0
    %847 = vmatpush1.msra.mxu0 %v785
    %848 = vmatprep.subr.mxu0 0.0
    %849 = vmatpush1.msra.mxu0 %v786
    %850 = vmatprep.subr.mxu0 0.0
    %851 = vmatpush1.msra.mxu0 %v787
    %852 = vmatprep.mubr.f32.mxu0 %v423
    %853 = vmatmul.mubr.f32.gmra.mrb[0].mxu0 %v422
    %v854 = vpop.f32.mrb[0].mxu0
    %v855 = vadd.f32 0.0, %v854
    %v856 = vpop.f32.mrb[0].mxu0
    %857 = vdwg.mxu0
    %858 = vmatprep.subr.mxu0 0.0
    %859 = vmatpush1.msra.mxu0 %v724
    %860 = vmatprep.subr.mxu0 0.0
    %861 = vmatpush1.msra.mxu0 %v725
    %862 = vmatprep.subr.mxu0 0.0
    %863 = vmatpush1.msra.mxu0 %v726
    %864 = vmatprep.subr.mxu0 0.0
    %865 = vmatpush1.msra.mxu0 %v727
    %866 = vmatprep.subr.mxu0 0.0
    %867 = vmatpush1.msra.mxu0 %v728
    %868 = vmatprep.subr.mxu0 0.0
    %869 = vmatpush1.msra.mxu0 %v729
    %870 = vmatprep.subr.mxu0 0.0
    %871 = vmatpush1.msra.mxu0 %v730
    %872 = vmatprep.subr.mxu0 0.0
    %873 = vmatpush1.msra.mxu0 %v731
    %874 = vmatprep.subr.mxu0 0.0
    %875 = vmatpush1.msra.mxu0 %v732
    %876 = vmatprep.subr.mxu0 0.0
    %877 = vmatpush1.msra.mxu0 %v733
    %878 = vmatprep.subr.mxu0 0.0
    %879 = vmatpush1.msra.mxu0 %v734
    %880 = vmatprep.subr.mxu0 0.0
    %881 = vmatpush1.msra.mxu0 %v735
    %882 = vmatprep.subr.mxu0 0.0
    %883 = vmatpush1.msra.mxu0 %v736
    %884 = vmatprep.subr.mxu0 0.0
    %885 = vmatpush1.msra.mxu0 %v737
    %886 = vmatprep.subr.mxu0 0.0
    %887 = vmatpush1.msra.mxu0 %v738
    %888 = vmatprep.subr.mxu0 0.0
    %889 = vmatpush1.msra.mxu0 %v739
    %890 = vmatprep.subr.mxu0 0.0
    %891 = vmatpush1.msra.mxu0 %v740
    %892 = vmatprep.subr.mxu0 0.0
    %893 = vmatpush1.msra.mxu0 %v741
    %894 = vmatprep.subr.mxu0 0.0
    %895 = vmatpush1.msra.mxu0 %v742
    %896 = vmatprep.subr.mxu0 0.0
    %897 = vmatpush1.msra.mxu0 %v743
    %898 = vmatprep.subr.mxu0 0.0
    %899 = vmatpush1.msra.mxu0 %v744
    %900 = vmatprep.subr.mxu0 0.0
    %901 = vmatpush1.msra.mxu0 %v745
    %902 = vmatprep.subr.mxu0 0.0
    %903 = vmatpush1.msra.mxu0 %v746
    %904 = vmatprep.subr.mxu0 0.0
    %905 = vmatpush1.msra.mxu0 %v747
    %906 = vmatprep.subr.mxu0 0.0
    %907 = vmatpush1.msra.mxu0 %v748
    %908 = vmatprep.subr.mxu0 0.0
    %909 = vmatpush1.msra.mxu0 %v749
    %910 = vmatprep.subr.mxu0 0.0
    %911 = vmatpush1.msra.mxu0 %v750
    %912 = vmatprep.subr.mxu0 0.0
    %913 = vmatpush1.msra.mxu0 %v751
    %914 = vmatprep.subr.mxu0 0.0
    %915 = vmatpush1.msra.mxu0 %v752
    %916 = vmatprep.subr.mxu0 0.0
    %917 = vmatpush1.msra.mxu0 %v753
    %918 = vmatprep.subr.mxu0 0.0
    %919 = vmatpush1.msra.mxu0 %v754
    %920 = vmatprep.subr.mxu0 0.0
    %921 = vmatpush1.msra.mxu0 %v755
    %922 = vmatprep.mubr.f32.mxu0 %v723
    %923 = vmatmul.mubr.f32.gmra.mrb[0].mxu0 %v722
    %v924 = vpop.f32.mrb[0].mxu0
    %v925 = vadd.f32 %v855, %v924
    %v926 = vpop.f32.mrb[0].mxu0
    %927 = vdwg.mxu0
    %v928 = vld [vmem:[%s7] sm:$0x1]
    %v930 = vlaneseq
    %v931 = vshrl.u32 %v930, 7
    %v932 = vsub.s32 0, %v931
    %v933 = vrot.slane %v928, %v932
    %v935 = vadd.f32 %v925, %v933
    %936 = vst [vmem:[#allocation11] sm:$0xff] %v935
    // Predicated region
    $region54: #{tpu_custom_call.1} parent=1 // pred_check
      _
    $region55: #{tpu_custom_call.1} parent=1 // pred_check_branch
      %938 = sbr.rel (0) target = $region57
    $region56: #{tpu_custom_call.1} parent=1 // pred_region
      %s940 = ssub.s32 128, 128
      %941 = vsyncadd [#allocation4], %s940
      %s943 = sshll.u32 [#allocation11], 4
      %s944 = int_to_ptr.vmem [resolvable:$true] %s943
      %946 = dma.vmem_to_hbm [thread:$0]  %s944, 128, %s8, [#allocation4]
    $region57: #{tpu_custom_call.1} parent=1 // pred_fallthru
      _
    // Predicated region
    $region58: #{tpu_custom_call.1} parent=1 // pred_check
      _
    $region59: #{tpu_custom_call.1} parent=1 // pred_check_branch
      %948 = sbr.rel (0) target = $region61
    $region60: #{tpu_custom_call.1} parent=1 // pred_region
      %949 = dma.done [#allocation4], 128
    $region61: #{tpu_custom_call.1} parent=1 // pred_fallthru
      _
    %950 = vsyncpa [#allocation3], 1
    %951 = vsyncpa [#allocation6], 1
    %952 = vsyncpa [#allocation9], 1
    %953 = vsyncpa [#allocation4], 1

// kernel: tpu_custom_call.1
$region0: #{tpu_custom_call.1}
  #allocation0 [shape = 'u32[]', space=smem, size = 0x4, offset = 0x4, fixed_abs, tag = 'smem constant byte address 0x4 - core index']
  #allocation1 [shape = 'u32[144,128]{1,0:T(1,128)}', space=vmem, size = 0x12000, scoped, tag = 'internal scratch']
  %s0 = inlined_call_operand.hbm [shape: f32[8,32], index: 0, kind: input, shape index: {}]
  %s1 = inlined_call_operand.hbm [shape: f32[32,768], index: 1, kind: input, shape index: {}]
  %s2 = inlined_call_operand.vmem [shape: f32[1,768], index: 2, kind: input, shape index: {}]
  %s3 = inlined_call_operand.hbm [shape: f32[512,256], index: 3, kind: input, shape index: {}]
  %s4 = inlined_call_operand.vmem [shape: f32[1,256], index: 4, kind: input, shape index: {}]
  %s5 = inlined_call_operand.hbm [shape: f32[256,128], index: 5, kind: input, shape index: {}]
  %s6 = inlined_call_operand.hbm [shape: f32[256,128], index: 6, kind: input, shape index: {}]
  %s7 = inlined_call_operand.vmem [shape: f32[1,128], index: 7, kind: input, shape index: {}]
  %s8 = inlined_call_operand.hbm [shape: f32[8,128], index: 8, kind: output, shape index: {}]
  %s9 = sld [smem:[#allocation0]]
  $region62: #{tpu_custom_call.1} parent=0
    _
  %s11 = ssub.s32 1, %s9
  %s12 = scalar_select 0, %s11, %s9
  $region1: #{tpu_custom_call.1} parent=0
    #allocation2 [shape = 'u8[4096]{0}', space=vmem, size = 0x1000, scoped, tag = 'input window, operand 0, single buffered']
    #allocation3 [shape = 's32[1]{0}', space=sflag, size = 0x4, scoped, tag = 'scoped memory for tpu_custom_call.1']
    #allocation4 [shape = 's32[1]{0}', space=sflag, size = 0x4, scoped, tag = 'scoped memory for tpu_custom_call.1']
    #allocation5 [shape = 'u8[98304]{0}', space=vmem, size = 0x18000, scoped, tag = 'input window, operand 1, single buffered']
    #allocation6 [shape = 's32[1]{0}', space=sflag, size = 0x4, scoped, tag = 'scoped memory for tpu_custom_call.1']
    #allocation7 [shape = 'u8[524288]{0}', space=vmem, size = 0x80000, scoped, tag = 'input window, operand 3, single buffered']
    #allocation8 [shape = 'u8[131072]{0}', space=vmem, size = 0x20000, scoped, tag = 'input window, operand 5, single buffered']
    #allocation9 [shape = 's32[1]{0}', space=sflag, size = 0x4, scoped, tag = 'scoped memory for tpu_custom_call.1']
    #allocation10 [shape = 'u8[131072]{0}', space=vmem, size = 0x20000, scoped, tag = 'input window, operand 6, single buffered']
    #allocation11 [shape = 'u8[4096]{0}', space=vmem, size = 0x1000, scoped, tag = 'output window, operand 0, single buffered']
    %13 = vsyncpa [#allocation3], 0
    %14 = vsyncpa [#allocation6], 0
    %15 = vsyncpa [#allocation9], 0
    %16 = vsyncpa [#allocation4], 0
    // Predicated region
    $region2: #{tpu_custom_call.1} parent=1 // pred_check
      _
    $region3: #{tpu_custom_call.1} parent=1 // pred_check_branch
      %18 = sbr.rel (0) target = $region5
    $region4: #{tpu_custom_call.1} parent=1 // pred_region
      %s20 = ssub.s32 128, 128
      %21 = vsyncadd [#allocation3], %s20
      %s23 = sshll.u32 [#allocation2], 4
      %s24 = int_to_ptr.vmem [resolvable:$true] %s23
      %26 = dma.hbm_to_vmem [thread:$0]  %s0, 128, %s24, [#allocation3]
    $region5: #{tpu_custom_call.1} parent=1 // pred_fallthru
      _
    // Predicated region
    $region6: #{tpu_custom_call.1} parent=1 // pred_check
      _
    $region7: #{tpu_custom_call.1} parent=1 // pred_check_branch
      %28 = sbr.rel (0) target = $region9
    $region8: #{tpu_custom_call.1} parent=1 // pred_region
      %s30 = ssub.s32 3072, 3072
      %31 = vsyncadd [#allocation6], %s30
      %s32 = sshll.u32 [#allocation5], 4
      %s33 = int_to_ptr.vmem [resolvable:$true] %s32
      %38 = dma.hbm_to_vmem [thread:$0]  %s1, 3072, %s33, [#allocation6], 768, 768, 48
    $region9: #{tpu_custom_call.1} parent=1 // pred_fallthru
      _
    // Predicated region
    $region10: #{tpu_custom_call.1} parent=1 // pred_check
      _
    $region11: #{tpu_custom_call.1} parent=1 // pred_check_branch
      %40 = sbr.rel (0) target = $region13
    $region12: #{tpu_custom_call.1} parent=1 // pred_region
      _
    $region13: #{tpu_custom_call.1} parent=1 // pred_fallthru
      _
    // Predicated region
    $region14: #{tpu_custom_call.1} parent=1 // pred_check
      _
    $region15: #{tpu_custom_call.1} parent=1 // pred_check_branch
      %42 = sbr.rel (0) target = $region17
    $region16: #{tpu_custom_call.1} parent=1 // pred_region
      %s44 = ssub.s32 16384, 16384
      %45 = vsyncadd [#allocation6], %s44
      %s46 = sshll.u32 [#allocation7], 4
      %s47 = int_to_ptr.vmem [resolvable:$true] %s46
      %52 = dma.hbm_to_vmem [thread:$0]  %s3, 16384, %s47, [#allocation6], 256, 256, 16
    $region17: #{tpu_custom_call.1} parent=1 // pred_fallthru
      _
    // Predicated region
    $region18: #{tpu_custom_call.1} parent=1 // pred_check
      _
    $region19: #{tpu_custom_call.1} parent=1 // pred_check_branch
      %54 = sbr.rel (0) target = $region21
    $region20: #{tpu_custom_call.1} parent=1 // pred_region
      _
    $region21: #{tpu_custom_call.1} parent=1 // pred_fallthru
      _
    // Predicated region
    $region22: #{tpu_custom_call.1} parent=1 // pred_check
      _
    $region23: #{tpu_custom_call.1} parent=1 // pred_check_branch
      %56 = sbr.rel (0) target = $region25
    $region24: #{tpu_custom_call.1} parent=1 // pred_region
      %s58 = ssub.s32 4096, 4096
      %59 = vsyncadd [#allocation9], %s58
      %s60 = sshll.u32 [#allocation8], 4
      %s61 = int_to_ptr.vmem [resolvable:$true] %s60
      %66 = dma.hbm_to_vmem [thread:$0]  %s5, 4096, %s61, [#allocation9], 128, 128, 8
    $region25: #{tpu_custom_call.1} parent=1 // pred_fallthru
      _
    // Predicated region
    $region26: #{tpu_custom_call.1} parent=1 // pred_check
      _
    $region27: #{tpu_custom_call.1} parent=1 // pred_check_branch
      %68 = sbr.rel (0) target = $region29
    $region28: #{tpu_custom_call.1} parent=1 // pred_region
      %s70 = ssub.s32 4096, 4096
      %71 = vsyncadd [#allocation9], %s70
      %s72 = sshll.u32 [#allocation10], 4
      %s73 = int_to_ptr.vmem [resolvable:$true] %s72
      %78 = dma.hbm_to_vmem [thread:$0]  %s6, 4096, %s73, [#allocation9], 128, 128, 8
    $region29: #{tpu_custom_call.1} parent=1 // pred_fallthru
      _
    // Predicated region
    $region30: #{tpu_custom_call.1} parent=1 // pred_check
      _
    $region31: #{tpu_custom_call.1} parent=1 // pred_check_branch
      %80 = sbr.rel (0) target = $region33
    $region32: #{tpu_custom_call.1} parent=1 // pred_region
      _
    $region33: #{tpu_custom_call.1} parent=1 // pred_fallthru
      _
    // Predicated region
    $region34: #{tpu_custom_call.1} parent=1 // pred_check
      _
    $region35: #{tpu_custom_call.1} parent=1 // pred_check_branch
      %82 = sbr.rel (0) target = $region37
    $region36: #{tpu_custom_call.1} parent=1 // pred_region
      %83 = dma.done [#allocation3], 128
    $region37: #{tpu_custom_call.1} parent=1 // pred_fallthru
      _
    // Predicated region
    $region38: #{tpu_custom_call.1} parent=1 // pred_check
      _
    $region39: #{tpu_custom_call.1} parent=1 // pred_check_branch
      %85 = sbr.rel (0) target = $region41
    $region40: #{tpu_custom_call.1} parent=1 // pred_region
      %86 = dma.done [#allocation6], 3072
    $region41: #{tpu_custom_call.1} parent=1 // pred_fallthru
      _
    // Predicated region
    $region42: #{tpu_custom_call.1} parent=1 // pred_check
      _
    $region43: #{tpu_custom_call.1} parent=1 // pred_check_branch
      %88 = sbr.rel (0) target = $region45
    $region44: #{tpu_custom_call.1} parent=1 // pred_region
      %89 = dma.done [#allocation6], 16384
    $region45: #{tpu_custom_call.1} parent=1 // pred_fallthru
      _
    // Predicated region
    $region46: #{tpu_custom_call.1} parent=1 // pred_check
      _
    $region47: #{tpu_custom_call.1} parent=1 // pred_check_branch
      %91 = sbr.rel (0) target = $region49
    $region48: #{tpu_custom_call.1} parent=1 // pred_region
      %92 = dma.done [#allocation9], 4096
    $region49: #{tpu_custom_call.1} parent=1 // pred_fallthru
      _
    // Predicated region
    $region50: #{tpu_custom_call.1} parent=1 // pred_check
      _
    $region51: #{tpu_custom_call.1} parent=1 // pred_check_branch
      %94 = sbr.rel (0) target = $region53
    $region52: #{tpu_custom_call.1} parent=1 // pred_region
      %95 = dma.done [#allocation9], 4096
    $region53: #{tpu_custom_call.1} parent=1 // pred_fallthru
      _
    %v96 = vld [vmem:[#allocation2] sm:$0xff]
    %v97 = vld [vmem:[#allocation5] sm:$0xff]
    %v98 = vld [vmem:[#allocation5 + $0x8] sm:$0xff]
    %v99 = vld [vmem:[#allocation5 + $0x10] sm:$0xff]
    %v100 = vld [vmem:[#allocation5 + $0x18] sm:$0xff]
    %v101 = vld [vmem:[#allocation5 + $0x20] sm:$0xff]
    %v102 = vld [vmem:[#allocation5 + $0x28] sm:$0xff]
    %v103 = vld [vmem:[#allocation5 + $0x30] sm:$0xff]
    %v104 = vld [vmem:[#allocation5 + $0x38] sm:$0xff]
    %v105 = vld [vmem:[#allocation5 + $0x40] sm:$0xff]
    %v106 = vld [vmem:[#allocation5 + $0x48] sm:$0xff]
    %v107 = vld [vmem:[#allocation5 + $0x50] sm:$0xff]
    %v108 = vld [vmem:[#allocation5 + $0x58] sm:$0xff]
    %v109 = vld [vmem:[#allocation5 + $0x60] sm:$0xff]
    %v110 = vld [vmem:[#allocation5 + $0x68] sm:$0xff]
    %v111 = vld [vmem:[#allocation5 + $0x70] sm:$0xff]
    %v112 = vld [vmem:[#allocation5 + $0x78] sm:$0xff]
    %v113 = vld [vmem:[#allocation5 + $0x80] sm:$0xff]
    %v114 = vld [vmem:[#allocation5 + $0x88] sm:$0xff]
    %v115 = vld [vmem:[#allocation5 + $0x90] sm:$0xff]
    %v116 = vld [vmem:[#allocation5 + $0x98] sm:$0xff]
    %v117 = vld [vmem:[#allocation5 + $0xa0] sm:$0xff]
    %v118 = vld [vmem:[#allocation5 + $0xa8] sm:$0xff]
    %v119 = vld [vmem:[#allocation5 + $0xb0] sm:$0xff]
    %v120 = vld [vmem:[#allocation5 + $0xb8] sm:$0xff]
    %v121 = vld [vmem:[%s2] sm:$0x3f]
    %v123 = vlaneseq
    %v124 = vshrl.u32 %v123, 7
    %v125 = vsub.s32 0, %v124
    %v126 = vrot.slane %v121, %v125
    %v127 = vlaneseq
    %v128 = vshrl.u32 %v127, 7
    %v129 = vsub.s32 1, %v128
    %v130 = vrot.slane %v121, %v129
    %v131 = vlaneseq
    %v132 = vshrl.u32 %v131, 7
    %v133 = vsub.s32 2, %v132
    %v134 = vrot.slane %v121, %v133
    %v135 = vlaneseq
    %v136 = vshrl.u32 %v135, 7
    %v137 = vsub.s32 3, %v136
    %v138 = vrot.slane %v121, %v137
    %v139 = vlaneseq
    %v140 = vshrl.u32 %v139, 7
    %v141 = vsub.s32 4, %v140
    %v142 = vrot.slane %v121, %v141
    %v143 = vlaneseq
    %v144 = vshrl.u32 %v143, 7
    %v145 = vsub.s32 5, %v144
    %v146 = vrot.slane %v121, %v145
    %vm153 = vcmask 261120
    %v155 = vsel %vm153, %v96, 0
    %157 = vmatprep.subr.mxu0 %v98
    %158 = vmatpush1.msra.mxu0 %v97
    %159 = vmatprep.subr.mxu0 %v104
    %160 = vmatpush1.msra.mxu0 %v103
    %161 = vmatprep.subr.mxu0 %v110
    %162 = vmatpush1.msra.mxu0 %v109
    %163 = vmatprep.subr.mxu0 %v116
    %164 = vmatpush1.msra.mxu0 %v115
    %165 = vmatprep.subr.mxu0 0.0
    %166 = vmatpush1.msra.mxu0 0.0
    %167 = vmatprep.subr.mxu0 0.0
    %168 = vmatpush1.msra.mxu0 0.0
    %169 = vmatprep.subr.mxu0 0.0
    %170 = vmatpush1.msra.mxu0 0.0
    %171 = vmatprep.subr.mxu0 0.0
    %172 = vmatpush1.msra.mxu0 0.0
    %173 = vmatprep.subr.mxu0 0.0
    %174 = vmatpush1.msra.mxu0 0.0
    %175 = vmatprep.subr.mxu0 0.0
    %176 = vmatpush1.msra.mxu0 0.0
    %177 = vmatprep.subr.mxu0 0.0
    %178 = vmatpush1.msra.mxu0 0.0
    %179 = vmatprep.subr.mxu0 0.0
    %180 = vmatpush1.msra.mxu0 0.0
    %181 = vmatprep.subr.mxu0 0.0
    %182 = vmatpush1.msra.mxu0 0.0
    %183 = vmatprep.subr.mxu0 0.0
    %184 = vmatpush1.msra.mxu0 0.0
    %185 = vmatprep.subr.mxu0 0.0
    %186 = vmatpush1.msra.mxu0 0.0
    %187 = vmatprep.subr.mxu0 0.0
    %188 = vmatpush1.msra.mxu0 0.0
    %189 = vmatprep.subr.mxu0 0.0
    %190 = vmatpush1.msra.mxu0 0.0
    %191 = vmatprep.subr.mxu0 0.0
    %192 = vmatpush1.msra.mxu0 0.0
    %193 = vmatprep.subr.mxu0 0.0
    %194 = vmatpush1.msra.mxu0 0.0
    %195 = vmatprep.subr.mxu0 0.0
    %196 = vmatpush1.msra.mxu0 0.0
    %197 = vmatprep.subr.mxu0 0.0
    %198 = vmatpush1.msra.mxu0 0.0
    %199 = vmatprep.subr.mxu0 0.0
    %200 = vmatpush1.msra.mxu0 0.0
    %201 = vmatprep.subr.mxu0 0.0
    %202 = vmatpush1.msra.mxu0 0.0
    %203 = vmatprep.subr.mxu0 0.0
    %204 = vmatpush1.msra.mxu0 0.0
    %205 = vmatprep.subr.mxu0 0.0
    %206 = vmatpush1.msra.mxu0 0.0
    %207 = vmatprep.subr.mxu0 0.0
    %208 = vmatpush1.msra.mxu0 0.0
    %209 = vmatprep.subr.mxu0 0.0
    %210 = vmatpush1.msra.mxu0 0.0
    %211 = vmatprep.subr.mxu0 0.0
    %212 = vmatpush1.msra.mxu0 0.0
    %213 = vmatprep.subr.mxu0 0.0
    %214 = vmatpush1.msra.mxu0 0.0
    %215 = vmatprep.subr.mxu0 0.0
    %216 = vmatpush1.msra.mxu0 0.0
    %217 = vmatprep.subr.mxu0 0.0
    %218 = vmatpush1.msra.mxu0 0.0
    %219 = vmatprep.subr.mxu0 0.0
    %220 = vmatpush1.msra.mxu0 0.0
    %221 = vmatprep.mubr.f32.mxu0 0.0
    %222 = vmatmul.mubr.f32.gmra.mrb[0].mxu0 %v155
    %v223 = vpop.f32.mrb[0].mxu0
    %v224 = vadd.f32 %v126, %v223
    %v225 = vpop.f32.mrb[0].mxu0
    %v226 = vadd.f32 %v130, %v225
    %227 = vdwg.mxu0
    %228 = vmatprep.subr.mxu0 %v100
    %229 = vmatpush1.msra.mxu0 %v99
    %230 = vmatprep.subr.mxu0 %v106
    %231 = vmatpush1.msra.mxu0 %v105
    %232 = vmatprep.subr.mxu0 %v112
    %233 = vmatpush1.msra.mxu0 %v111
    %234 = vmatprep.subr.mxu0 %v118
    %235 = vmatpush1.msra.mxu0 %v117
    %236 = vmatprep.subr.mxu0 0.0
    %237 = vmatpush1.msra.mxu0 0.0
    %238 = vmatprep.subr.mxu0 0.0
    %239 = vmatpush1.msra.mxu0 0.0
    %240 = vmatprep.subr.mxu0 0.0
    %241 = vmatpush1.msra.mxu0 0.0
    %242 = vmatprep.subr.mxu0 0.0
    %243 = vmatpush1.msra.mxu0 0.0
    %244 = vmatprep.subr.mxu0 0.0
    %245 = vmatpush1.msra.mxu0 0.0
    %246 = vmatprep.subr.mxu0 0.0
    %247 = vmatpush1.msra.mxu0 0.0
    %248 = vmatprep.subr.mxu0 0.0
    %249 = vmatpush1.msra.mxu0 0.0
    %250 = vmatprep.subr.mxu0 0.0
    %251 = vmatpush1.msra.mxu0 0.0
    %252 = vmatprep.subr.mxu0 0.0
    %253 = vmatpush1.msra.mxu0 0.0
    %254 = vmatprep.subr.mxu0 0.0
    %255 = vmatpush1.msra.mxu0 0.0
    %256 = vmatprep.subr.mxu0 0.0
    %257 = vmatpush1.msra.mxu0 0.0
    %258 = vmatprep.subr.mxu0 0.0
    %259 = vmatpush1.msra.mxu0 0.0
    %260 = vmatprep.subr.mxu0 0.0
    %261 = vmatpush1.msra.mxu0 0.0
    %262 = vmatprep.subr.mxu0 0.0
    %263 = vmatpush1.msra.mxu0 0.0
    %264 = vmatprep.subr.mxu0 0.0
    %265 = vmatpush1.msra.mxu0 0.0
    %266 = vmatprep.subr.mxu0 0.0
    %267 = vmatpush1.msra.mxu0 0.0
    %268 = vmatprep.subr.mxu0 0.0
    %269 = vmatpush1.msra.mxu0 0.0
    %270 = vmatprep.subr.mxu0 0.0
    %271 = vmatpush1.msra.mxu0 0.0
    %272 = vmatprep.subr.mxu0 0.0
    %273 = vmatpush1.msra.mxu0 0.0
    %274 = vmatprep.subr.mxu0 0.0
    %275 = vmatpush1.msra.mxu0 0.0
    %276 = vmatprep.subr.mxu0 0.0
    %277 = vmatpush1.msra.mxu0 0.0
    %278 = vmatprep.subr.mxu0 0.0
    %279 = vmatpush1.msra.mxu0 0.0
    %280 = vmatprep.subr.mxu0 0.0
    %281 = vmatpush1.msra.mxu0 0.0
    %282 = vmatprep.subr.mxu0 0.0
    %283 = vmatpush1.msra.mxu0 0.0
    %284 = vmatprep.subr.mxu0 0.0
    %285 = vmatpush1.msra.mxu0 0.0
    %286 = vmatprep.subr.mxu0 0.0
    %287 = vmatpush1.msra.mxu0 0.0
    %288 = vmatprep.subr.mxu0 0.0
    %289 = vmatpush1.msra.mxu0 0.0
    %290 = vmatprep.subr.mxu0 0.0
    %291 = vmatpush1.msra.mxu0 0.0
    %292 = vmatprep.mubr.f32.mxu0 0.0
    %293 = vmatmul.mubr.f32.gmra.mrb[0].mxu0 %v155
    %v294 = vpop.f32.mrb[0].mxu0
    %v295 = vadd.f32 %v134, %v294
    %v296 = vpop.f32.mrb[0].mxu0
    %v297 = vadd.f32 %v138, %v296
    %298 = vdwg.mxu0
    %299 = vmatprep.subr.mxu0 %v102
    %300 = vmatpush1.msra.mxu0 %v101
    %301 = vmatprep.subr.mxu0 %v108
    %302 = vmatpush1.msra.mxu0 %v107
    %303 = vmatprep.subr.mxu0 %v114
    %304 = vmatpush1.msra.mxu0 %v113
    %305 = vmatprep.subr.mxu0 %v120
    %306 = vmatpush1.msra.mxu0 %v119
    %307 = vmatprep.subr.mxu0 0.0
    %308 = vmatpush1.msra.mxu0 0.0
    %309 = vmatprep.subr.mxu0 0.0
    %310 = vmatpush1.msra.mxu0 0.0
    %311 = vmatprep.subr.mxu0 0.0
    %312 = vmatpush1.msra.mxu0 0.0
    %313 = vmatprep.subr.mxu0 0.0
    %314 = vmatpush1.msra.mxu0 0.0
    %315 = vmatprep.subr.mxu0 0.0
    %316 = vmatpush1.msra.mxu0 0.0
    %317 = vmatprep.subr.mxu0 0.0
    %318 = vmatpush1.msra.mxu0 0.0
    %319 = vmatprep.subr.mxu0 0.0
    %320 = vmatpush1.msra.mxu0 0.0
    %321 = vmatprep.subr.mxu0 0.0
    %322 = vmatpush1.msra.mxu0 0.0
    %323 = vmatprep.subr.mxu0 0.0
    %324 = vmatpush1.msra.mxu0 0.0
    %325 = vmatprep.subr.mxu0 0.0
    %326 = vmatpush1.msra.mxu0 0.0
    %327 = vmatprep.subr.mxu0 0.0
    %328 = vmatpush1.msra.mxu0 0.0
    %329 = vmatprep.subr.mxu0 0.0
    %330 = vmatpush1.msra.mxu0 0.0
    %331 = vmatprep.subr.mxu0 0.0
    %332 = vmatpush1.msra.mxu0 0.0
    %333 = vmatprep.subr.mxu0 0.0
    %334 = vmatpush1.msra.mxu0 0.0
    %335 = vmatprep.subr.mxu0 0.0
    %336 = vmatpush1.msra.mxu0 0.0
    %337 = vmatprep.subr.mxu0 0.0
    %338 = vmatpush1.msra.mxu0 0.0
    %339 = vmatprep.subr.mxu0 0.0
    %340 = vmatpush1.msra.mxu0 0.0
    %341 = vmatprep.subr.mxu0 0.0
    %342 = vmatpush1.msra.mxu0 0.0
    %343 = vmatprep.subr.mxu0 0.0
    %344 = vmatpush1.msra.mxu0 0.0
    %345 = vmatprep.subr.mxu0 0.0
    %346 = vmatpush1.msra.mxu0 0.0
    %347 = vmatprep.subr.mxu0 0.0
    %348 = vmatpush1.msra.mxu0 0.0
    %349 = vmatprep.subr.mxu0 0.0
    %350 = vmatpush1.msra.mxu0 0.0
    %351 = vmatprep.subr.mxu0 0.0
    %352 = vmatpush1.msra.mxu0 0.0
    %353 = vmatprep.subr.mxu0 0.0
    %354 = vmatpush1.msra.mxu0 0.0
    %355 = vmatprep.subr.mxu0 0.0
    %356 = vmatpush1.msra.mxu0 0.0
    %357 = vmatprep.subr.mxu0 0.0
    %358 = vmatpush1.msra.mxu0 0.0
    %359 = vmatprep.subr.mxu0 0.0
    %360 = vmatpush1.msra.mxu0 0.0
    %361 = vmatprep.subr.mxu0 0.0
    %362 = vmatpush1.msra.mxu0 0.0
    %363 = vmatprep.mubr.f32.mxu0 0.0
    %364 = vmatmul.mubr.f32.gmra.mrb[0].mxu0 %v155
    %v365 = vpop.f32.mrb[0].mxu0
    %v366 = vadd.f32 %v142, %v365
    %v367 = vpop.f32.mrb[0].mxu0
    %v368 = vadd.f32 %v146, %v367
    %369 = vdwg.mxu0
    %v370 = vmul.f32 %v224, 0.5
    %v371 = vmul.f32 %v226, 0.5
    %v372 = vmul.f32 %v295, 0.5
    %v373 = vmul.f32 %v297, 0.5
    %v374 = vmul.f32 %v366, 0.5
    %v375 = vmul.f32 %v368, 0.5
    %v376 = vmul.f32 %v224, 0.044715
    %v377 = vmul.f32 %v226, 0.044715
    %v378 = vmul.f32 %v295, 0.044715
    %v379 = vmul.f32 %v297, 0.044715
    %v380 = vmul.f32 %v366, 0.044715
    %v381 = vmul.f32 %v368, 0.044715
    %v382 = vmul.f32 %v376, %v224
    %v383 = vmul.f32 %v377, %v226
    %v384 = vmul.f32 %v378, %v295
    %v385 = vmul.f32 %v379, %v297
    %v386 = vmul.f32 %v380, %v366
    %v387 = vmul.f32 %v381, %v368
    %v388 = vmul.f32 %v382, %v224
    %v389 = vmul.f32 %v383, %v226
    %v390 = vmul.f32 %v384, %v295
    %v391 = vmul.f32 %v385, %v297
    %v392 = vmul.f32 %v386, %v366
    %v393 = vmul.f32 %v387, %v368
    %v394 = vadd.f32 %v224, %v388
    %v395 = vadd.f32 %v226, %v389
    %v396 = vadd.f32 %v295, %v390
    %v397 = vadd.f32 %v297, %v391
    %v398 = vadd.f32 %v366, %v392
    %v399 = vadd.f32 %v368, %v393
    %v400 = vmul.f32 %v394, 0.7978846
    %v401 = vmul.f32 %v395, 0.7978846
    %v402 = vmul.f32 %v396, 0.7978846
    %v403 = vmul.f32 %v397, 0.7978846
    %v404 = vmul.f32 %v398, 0.7978846
    %v405 = vmul.f32 %v399, 0.7978846
    %v406 = vtanh.pop %v400
    %v407 = vtanh.pop %v401
    %v408 = vtanh.pop %v402
    %v409 = vtanh.pop %v403
    %v410 = vtanh.pop %v404
    %v411 = vtanh.pop %v405
    %v412 = vadd.f32 %v406, 1.0
    %v413 = vadd.f32 %v407, 1.0
    %v414 = vadd.f32 %v408, 1.0
    %v415 = vadd.f32 %v409, 1.0
    %v416 = vadd.f32 %v410, 1.0
    %v417 = vadd.f32 %v411, 1.0
    %v418 = vmul.f32 %v370, %v412
    %v419 = vmul.f32 %v371, %v413
    %v420 = vmul.f32 %v372, %v414
    %v421 = vmul.f32 %v373, %v415
    %v422 = vmul.f32 %v374, %v416
    %v423 = vmul.f32 %v375, %v417
    %v424 = vld [vmem:[#allocation7] sm:$0xff]
    %v425 = vld [vmem:[#allocation7 + $0x8] sm:$0xff]
    %v426 = vld [vmem:[#allocation7 + $0x10] sm:$0xff]
    %v427 = vld [vmem:[#allocation7 + $0x18] sm:$0xff]
    %v428 = vld [vmem:[#allocation7 + $0x20] sm:$0xff]
    %v429 = vld [vmem:[#allocation7 + $0x28] sm:$0xff]
    %v430 = vld [vmem:[#allocation7 + $0x30] sm:$0xff]
    %v431 = vld [vmem:[#allocation7 + $0x38] sm:$0xff]
    %v432 = vld [vmem:[#allocation7 + $0x40] sm:$0xff]
    %v433 = vld [vmem:[#allocation7 + $0x48] sm:$0xff]
    %v434 = vld [vmem:[#allocation7 + $0x50] sm:$0xff]
    %v435 = vld [vmem:[#allocation7 + $0x58] sm:$0xff]
    %v436 = vld [vmem:[#allocation7 + $0x60] sm:$0xff]
    %v437 = vld [vmem:[#allocation7 + $0x68] sm:$0xff]
    %v438 = vld [vmem:[#allocation7 + $0x70] sm:$0xff]
    %v439 = vld [vmem:[#allocation7 + $0x78] sm:$0xff]
    %v440 = vld [vmem:[#allocation7 + $0x80] sm:$0xff]
    %v441 = vld [vmem:[#allocation7 + $0x88] sm:$0xff]
    %v442 = vld [vmem:[#allocation7 + $0x90] sm:$0xff]
    %v443 = vld [vmem:[#allocation7 + $0x98] sm:$0xff]
    %v444 = vld [vmem:[#allocation7 + $0xa0] sm:$0xff]
    %v445 = vld [vmem:[#allocation7 + $0xa8] sm:$0xff]
    %v446 = vld [vmem:[#allocation7 + $0xb0] sm:$0xff]
    %v447 = vld [vmem:[#allocation7 + $0xb8] sm:$0xff]
    %v448 = vld [vmem:[#allocation7 + $0xc0] sm:$0xff]
    %v449 = vld [vmem:[#allocation7 + $0xc8] sm:$0xff]
    %v450 = vld [vmem:[#allocation7 + $0xd0] sm:$0xff]
    %v451 = vld [vmem:[#allocation7 + $0xd8] sm:$0xff]
    %v452 = vld [vmem:[#allocation7 + $0xe0] sm:$0xff]
    %v453 = vld [vmem:[#allocation7 + $0xe8] sm:$0xff]
    %v454 = vld [vmem:[#allocation7 + $0xf0] sm:$0xff]
    %v455 = vld [vmem:[#allocation7 + $0xf8] sm:$0xff]
    %v456 = vld [vmem:[#allocation7 + $0x100] sm:$0xff]
    %v457 = vld [vmem:[#allocation7 + $0x108] sm:$0xff]
    %v458 = vld [vmem:[#allocation7 + $0x110] sm:$0xff]
    %v459 = vld [vmem:[#allocation7 + $0x118] sm:$0xff]
    %v460 = vld [vmem:[#allocation7 + $0x120] sm:$0xff]
    %v461 = vld [vmem:[#allocation7 + $0x128] sm:$0xff]
    %v462 = vld [vmem:[#allocation7 + $0x130] sm:$0xff]
    %v463 = vld [vmem:[#allocation7 + $0x138] sm:$0xff]
    %v464 = vld [vmem:[#allocation7 + $0x140] sm:$0xff]
    %v465 = vld [vmem:[#allocation7 + $0x148] sm:$0xff]
    %v466 = vld [vmem:[#allocation7 + $0x150] sm:$0xff]
    %v467 = vld [vmem:[#allocation7 + $0x158] sm:$0xff]
    %v468 = vld [vmem:[#allocation7 + $0x160] sm:$0xff]
    %v469 = vld [vmem:[#allocation7 + $0x168] sm:$0xff]
    %v470 = vld [vmem:[#allocation7 + $0x170] sm:$0xff]
    %v471 = vld [vmem:[#allocation7 + $0x178] sm:$0xff]
    %v472 = vld [vmem:[#allocation7 + $0x180] sm:$0xff]
    %v473 = vld [vmem:[#allocation7 + $0x188] sm:$0xff]
    %v474 = vld [vmem:[#allocation7 + $0x190] sm:$0xff]
    %v475 = vld [vmem:[#allocation7 + $0x198] sm:$0xff]
    %v476 = vld [vmem:[#allocation7 + $0x1a0] sm:$0xff]
    %v477 = vld [vmem:[#allocation7 + $0x1a8] sm:$0xff]
    %v478 = vld [vmem:[#allocation7 + $0x1b0] sm:$0xff]
    %v479 = vld [vmem:[#allocation7 + $0x1b8] sm:$0xff]
    %v480 = vld [vmem:[#allocation7 + $0x1c0] sm:$0xff]
    %v481 = vld [vmem:[#allocation7 + $0x1c8] sm:$0xff]
    %v482 = vld [vmem:[#allocation7 + $0x1d0] sm:$0xff]
    %v483 = vld [vmem:[#allocation7 + $0x1d8] sm:$0xff]
    %v484 = vld [vmem:[#allocation7 + $0x1e0] sm:$0xff]
    %v485 = vld [vmem:[#allocation7 + $0x1e8] sm:$0xff]
    %v486 = vld [vmem:[#allocation7 + $0x1f0] sm:$0xff]
    %v487 = vld [vmem:[#allocation7 + $0x1f8] sm:$0xff]
    %v488 = vld [vmem:[#allocation7 + $0x200] sm:$0xff]
    %v489 = vld [vmem:[#allocation7 + $0x208] sm:$0xff]
    %v490 = vld [vmem:[#allocation7 + $0x210] sm:$0xff]
    %v491 = vld [vmem:[#allocation7 + $0x218] sm:$0xff]
    %v492 = vld [vmem:[#allocation7 + $0x220] sm:$0xff]
    %v493 = vld [vmem:[#allocation7 + $0x228] sm:$0xff]
    %v494 = vld [vmem:[#allocation7 + $0x230] sm:$0xff]
    %v495 = vld [vmem:[#allocation7 + $0x238] sm:$0xff]
    %v496 = vld [vmem:[#allocation7 + $0x240] sm:$0xff]
    %v497 = vld [vmem:[#allocation7 + $0x248] sm:$0xff]
    %v498 = vld [vmem:[#allocation7 + $0x250] sm:$0xff]
    %v499 = vld [vmem:[#allocation7 + $0x258] sm:$0xff]
    %v500 = vld [vmem:[#allocation7 + $0x260] sm:$0xff]
    %v501 = vld [vmem:[#allocation7 + $0x268] sm:$0xff]
    %v502 = vld [vmem:[#allocation7 + $0x270] sm:$0xff]
    %v503 = vld [vmem:[#allocation7 + $0x278] sm:$0xff]
    %v504 = vld [vmem:[#allocation7 + $0x280] sm:$0xff]
    %v505 = vld [vmem:[#allocation7 + $0x288] sm:$0xff]
    %v506 = vld [vmem:[#allocation7 + $0x290] sm:$0xff]
    %v507 = vld [vmem:[#allocation7 + $0x298] sm:$0xff]
    %v508 = vld [vmem:[#allocation7 + $0x2a0] sm:$0xff]
    %v509 = vld [vmem:[#allocation7 + $0x2a8] sm:$0xff]
    %v510 = vld [vmem:[#allocation7 + $0x2b0] sm:$0xff]
    %v511 = vld [vmem:[#allocation7 + $0x2b8] sm:$0xff]
    %v512 = vld [vmem:[#allocation7 + $0x2c0] sm:$0xff]
    %v513 = vld [vmem:[#allocation7 + $0x2c8] sm:$0xff]
    %v514 = vld [vmem:[#allocation7 + $0x2d0] sm:$0xff]
    %v515 = vld [vmem:[#allocation7 + $0x2d8] sm:$0xff]
    %v516 = vld [vmem:[#allocation7 + $0x2e0] sm:$0xff]
    %v517 = vld [vmem:[#allocation7 + $0x2e8] sm:$0xff]
    %v518 = vld [vmem:[#allocation7 + $0x2f0] sm:$0xff]
    %v519 = vld [vmem:[#allocation7 + $0x2f8] sm:$0xff]
    %v520 = vld [vmem:[#allocation7 + $0x300] sm:$0xff]
    %v521 = vld [vmem:[#allocation7 + $0x308] sm:$0xff]
    %v522 = vld [vmem:[#allocation7 + $0x310] sm:$0xff]
    %v523 = vld [vmem:[#allocation7 + $0x318] sm:$0xff]
    %v524 = vld [vmem:[#allocation7 + $0x320] sm:$0xff]
    %v525 = vld [vmem:[#allocation7 + $0x328] sm:$0xff]
    %v526 = vld [vmem:[#allocation7 + $0x330] sm:$0xff]
    %v527 = vld [vmem:[#allocation7 + $0x338] sm:$0xff]
    %v528 = vld [vmem:[#allocation7 + $0x340] sm:$0xff]
    %v529 = vld [vmem:[#allocation7 + $0x348] sm:$0xff]
    %v530 = vld [vmem:[#allocation7 + $0x350] sm:$0xff]
    %v531 = vld [vmem:[#allocation7 + $0x358] sm:$0xff]
    %v532 = vld [vmem:[#allocation7 + $0x360] sm:$0xff]
    %v533 = vld [vmem:[#allocation7 + $0x368] sm:$0xff]
    %v534 = vld [vmem:[#allocation7 + $0x370] sm:$0xff]
    %v535 = vld [vmem:[#allocation7 + $0x378] sm:$0xff]
    %v536 = vld [vmem:[#allocation7 + $0x380] sm:$0xff]
    %v537 = vld [vmem:[#allocation7 + $0x388] sm:$0xff]
    %v538 = vld [vmem:[#allocation7 + $0x390] sm:$0xff]
    %v539 = vld [vmem:[#allocation7 + $0x398] sm:$0xff]
    %v540 = vld [vmem:[#allocation7 + $0x3a0] sm:$0xff]
    %v541 = vld [vmem:[#allocation7 + $0x3a8] sm:$0xff]
    %v542 = vld [vmem:[#allocation7 + $0x3b0] sm:$0xff]
    %v543 = vld [vmem:[#allocation7 + $0x3b8] sm:$0xff]
    %v544 = vld [vmem:[#allocation7 + $0x3c0] sm:$0xff]
    %v545 = vld [vmem:[#allocation7 + $0x3c8] sm:$0xff]
    %v546 = vld [vmem:[#allocation7 + $0x3d0] sm:$0xff]
    %v547 = vld [vmem:[#allocation7 + $0x3d8] sm:$0xff]
    %v548 = vld [vmem:[#allocation7 + $0x3e0] sm:$0xff]
    %v549 = vld [vmem:[#allocation7 + $0x3e8] sm:$0xff]
    %v550 = vld [vmem:[#allocation7 + $0x3f0] sm:$0xff]
    %v551 = vld [vmem:[#allocation7 + $0x3f8] sm:$0xff]
    %v552 = vld [vmem:[%s4] sm:$0x3]
    %v554 = vlaneseq
    %v555 = vshrl.u32 %v554, 7
    %v556 = vsub.s32 0, %v555
    %v557 = vrot.slane %v552, %v556
    %v558 = vlaneseq
    %v559 = vshrl.u32 %v558, 7
    %v560 = vsub.s32 1, %v559
    %v561 = vrot.slane %v552, %v560
    %564 = vmatprep.subr.mxu0 %v425
    %565 = vmatpush1.msra.mxu0 %v424
    %566 = vmatprep.subr.mxu0 %v427
    %567 = vmatpush1.msra.mxu0 %v426
    %568 = vmatprep.subr.mxu0 %v429
    %569 = vmatpush1.msra.mxu0 %v428
    %570 = vmatprep.subr.mxu0 %v431
    %571 = vmatpush1.msra.mxu0 %v430
    %572 = vmatprep.subr.mxu0 %v433
    %573 = vmatpush1.msra.mxu0 %v432
    %574 = vmatprep.subr.mxu0 %v435
    %575 = vmatpush1.msra.mxu0 %v434
    %576 = vmatprep.subr.mxu0 %v437
    %577 = vmatpush1.msra.mxu0 %v436
    %578 = vmatprep.subr.mxu0 %v439
    %579 = vmatpush1.msra.mxu0 %v438
    %580 = vmatprep.subr.mxu0 %v441
    %581 = vmatpush1.msra.mxu0 %v440
    %582 = vmatprep.subr.mxu0 %v443
    %583 = vmatpush1.msra.mxu0 %v442
    %584 = vmatprep.subr.mxu0 %v445
    %585 = vmatpush1.msra.mxu0 %v444
    %586 = vmatprep.subr.mxu0 %v447
    %587 = vmatpush1.msra.mxu0 %v446
    %588 = vmatprep.subr.mxu0 %v449
    %589 = vmatpush1.msra.mxu0 %v448
    %590 = vmatprep.subr.mxu0 %v451
    %591 = vmatpush1.msra.mxu0 %v450
    %592 = vmatprep.subr.mxu0 %v453
    %593 = vmatpush1.msra.mxu0 %v452
    %594 = vmatprep.subr.mxu0 %v455
    %595 = vmatpush1.msra.mxu0 %v454
    %596 = vmatprep.subr.mxu0 %v457
    %597 = vmatpush1.msra.mxu0 %v456
    %598 = vmatprep.subr.mxu0 %v459
    %599 = vmatpush1.msra.mxu0 %v458
    %600 = vmatprep.subr.mxu0 %v461
    %601 = vmatpush1.msra.mxu0 %v460
    %602 = vmatprep.subr.mxu0 %v463
    %603 = vmatpush1.msra.mxu0 %v462
    %604 = vmatprep.subr.mxu0 %v465
    %605 = vmatpush1.msra.mxu0 %v464
    %606 = vmatprep.subr.mxu0 %v467
    %607 = vmatpush1.msra.mxu0 %v466
    %608 = vmatprep.subr.mxu0 %v469
    %609 = vmatpush1.msra.mxu0 %v468
    %610 = vmatprep.subr.mxu0 %v471
    %611 = vmatpush1.msra.mxu0 %v470
    %612 = vmatprep.subr.mxu0 %v473
    %613 = vmatpush1.msra.mxu0 %v472
    %614 = vmatprep.subr.mxu0 %v475
    %615 = vmatpush1.msra.mxu0 %v474
    %616 = vmatprep.subr.mxu0 %v477
    %617 = vmatpush1.msra.mxu0 %v476
    %618 = vmatprep.subr.mxu0 %v479
    %619 = vmatpush1.msra.mxu0 %v478
    %620 = vmatprep.subr.mxu0 %v481
    %621 = vmatpush1.msra.mxu0 %v480
    %622 = vmatprep.subr.mxu0 %v483
    %623 = vmatpush1.msra.mxu0 %v482
    %624 = vmatprep.subr.mxu0 %v485
    %625 = vmatpush1.msra.mxu0 %v484
    %626 = vmatprep.subr.mxu0 %v487
    %627 = vmatpush1.msra.mxu0 %v486
    %628 = vmatprep.mubr.f32.mxu0 %v419
    %629 = vmatmul.mubr.f32.gmra.mrb[0].mxu0 %v418
    %v630 = vpop.f32.mrb[0].mxu0
    %v631 = vadd.f32 %v557, %v630
    %v632 = vpop.f32.mrb[0].mxu0
    %v633 = vadd.f32 %v561, %v632
    %634 = vdwg.mxu0
    %635 = vmatprep.subr.mxu0 %v489
    %636 = vmatpush1.msra.mxu0 %v488
    %637 = vmatprep.subr.mxu0 %v491
    %638 = vmatpush1.msra.mxu0 %v490
    %639 = vmatprep.subr.mxu0 %v493
    %640 = vmatpush1.msra.mxu0 %v492
    %641 = vmatprep.subr.mxu0 %v495
    %642 = vmatpush1.msra.mxu0 %v494
    %643 = vmatprep.subr.mxu0 %v497
    %644 = vmatpush1.msra.mxu0 %v496
    %645 = vmatprep.subr.mxu0 %v499
    %646 = vmatpush1.msra.mxu0 %v498
    %647 = vmatprep.subr.mxu0 %v501
    %648 = vmatpush1.msra.mxu0 %v500
    %649 = vmatprep.subr.mxu0 %v503
    %650 = vmatpush1.msra.mxu0 %v502
    %651 = vmatprep.subr.mxu0 %v505
    %652 = vmatpush1.msra.mxu0 %v504
    %653 = vmatprep.subr.mxu0 %v507
    %654 = vmatpush1.msra.mxu0 %v506
    %655 = vmatprep.subr.mxu0 %v509
    %656 = vmatpush1.msra.mxu0 %v508
    %657 = vmatprep.subr.mxu0 %v511
    %658 = vmatpush1.msra.mxu0 %v510
    %659 = vmatprep.subr.mxu0 %v513
    %660 = vmatpush1.msra.mxu0 %v512
    %661 = vmatprep.subr.mxu0 %v515
    %662 = vmatpush1.msra.mxu0 %v514
    %663 = vmatprep.subr.mxu0 %v517
    %664 = vmatpush1.msra.mxu0 %v516
    %665 = vmatprep.subr.mxu0 %v519
    %666 = vmatpush1.msra.mxu0 %v518
    %667 = vmatprep.subr.mxu0 %v521
    %668 = vmatpush1.msra.mxu0 %v520
    %669 = vmatprep.subr.mxu0 %v523
    %670 = vmatpush1.msra.mxu0 %v522
    %671 = vmatprep.subr.mxu0 %v525
    %672 = vmatpush1.msra.mxu0 %v524
    %673 = vmatprep.subr.mxu0 %v527
    %674 = vmatpush1.msra.mxu0 %v526
    %675 = vmatprep.subr.mxu0 %v529
    %676 = vmatpush1.msra.mxu0 %v528
    %677 = vmatprep.subr.mxu0 %v531
    %678 = vmatpush1.msra.mxu0 %v530
    %679 = vmatprep.subr.mxu0 %v533
    %680 = vmatpush1.msra.mxu0 %v532
    %681 = vmatprep.subr.mxu0 %v535
    %682 = vmatpush1.msra.mxu0 %v534
    %683 = vmatprep.subr.mxu0 %v537
    %684 = vmatpush1.msra.mxu0 %v536
    %685 = vmatprep.subr.mxu0 %v539
    %686 = vmatpush1.msra.mxu0 %v538
    %687 = vmatprep.subr.mxu0 %v541
    %688 = vmatpush1.msra.mxu0 %v540
    %689 = vmatprep.subr.mxu0 %v543
    %690 = vmatpush1.msra.mxu0 %v542
    %691 = vmatprep.subr.mxu0 %v545
    %692 = vmatpush1.msra.mxu0 %v544
    %693 = vmatprep.subr.mxu0 %v547
    %694 = vmatpush1.msra.mxu0 %v546
    %695 = vmatprep.subr.mxu0 %v549
    %696 = vmatpush1.msra.mxu0 %v548
    %697 = vmatprep.subr.mxu0 %v551
    %698 = vmatpush1.msra.mxu0 %v550
    %699 = vmatprep.mubr.f32.mxu0 %v421
    %700 = vmatmul.mubr.f32.gmra.mrb[0].mxu0 %v420
    %v701 = vpop.f32.mrb[0].mxu0
    %v702 = vadd.f32 %v631, %v701
    %v703 = vpop.f32.mrb[0].mxu0
    %v704 = vadd.f32 %v633, %v703
    %705 = vdwg.mxu0
    %v706 = vmul.f32 %v702, 0.5
    %v707 = vmul.f32 %v704, 0.5
    %v708 = vmul.f32 %v702, 0.044715
    %v709 = vmul.f32 %v704, 0.044715
    %v710 = vmul.f32 %v708, %v702
    %v711 = vmul.f32 %v709, %v704
    %v712 = vmul.f32 %v710, %v702
    %v713 = vmul.f32 %v711, %v704
    %v714 = vadd.f32 %v702, %v712
    %v715 = vadd.f32 %v704, %v713
    %v716 = vmul.f32 %v714, 0.7978846
    %v717 = vmul.f32 %v715, 0.7978846
    %v718 = vtanh.pop %v716
    %v719 = vtanh.pop %v717
    %v720 = vadd.f32 %v718, 1.0
    %v721 = vadd.f32 %v719, 1.0
    %v722 = vmul.f32 %v706, %v720
    %v723 = vmul.f32 %v707, %v721
    %v724 = vld [vmem:[#allocation8] sm:$0xff]
    %v725 = vld [vmem:[#allocation8 + $0x8] sm:$0xff]
    %v726 = vld [vmem:[#allocation8 + $0x10] sm:$0xff]
    %v727 = vld [vmem:[#allocation8 + $0x18] sm:$0xff]
    %v728 = vld [vmem:[#allocation8 + $0x20] sm:$0xff]
    %v729 = vld [vmem:[#allocation8 + $0x28] sm:$0xff]
    %v730 = vld [vmem:[#allocation8 + $0x30] sm:$0xff]
    %v731 = vld [vmem:[#allocation8 + $0x38] sm:$0xff]
    %v732 = vld [vmem:[#allocation8 + $0x40] sm:$0xff]
    %v733 = vld [vmem:[#allocation8 + $0x48] sm:$0xff]
    %v734 = vld [vmem:[#allocation8 + $0x50] sm:$0xff]
    %v735 = vld [vmem:[#allocation8 + $0x58] sm:$0xff]
    %v736 = vld [vmem:[#allocation8 + $0x60] sm:$0xff]
    %v737 = vld [vmem:[#allocation8 + $0x68] sm:$0xff]
    %v738 = vld [vmem:[#allocation8 + $0x70] sm:$0xff]
    %v739 = vld [vmem:[#allocation8 + $0x78] sm:$0xff]
    %v740 = vld [vmem:[#allocation8 + $0x80] sm:$0xff]
    %v741 = vld [vmem:[#allocation8 + $0x88] sm:$0xff]
    %v742 = vld [vmem:[#allocation8 + $0x90] sm:$0xff]
    %v743 = vld [vmem:[#allocation8 + $0x98] sm:$0xff]
    %v744 = vld [vmem:[#allocation8 + $0xa0] sm:$0xff]
    %v745 = vld [vmem:[#allocation8 + $0xa8] sm:$0xff]
    %v746 = vld [vmem:[#allocation8 + $0xb0] sm:$0xff]
    %v747 = vld [vmem:[#allocation8 + $0xb8] sm:$0xff]
    %v748 = vld [vmem:[#allocation8 + $0xc0] sm:$0xff]
    %v749 = vld [vmem:[#allocation8 + $0xc8] sm:$0xff]
    %v750 = vld [vmem:[#allocation8 + $0xd0] sm:$0xff]
    %v751 = vld [vmem:[#allocation8 + $0xd8] sm:$0xff]
    %v752 = vld [vmem:[#allocation8 + $0xe0] sm:$0xff]
    %v753 = vld [vmem:[#allocation8 + $0xe8] sm:$0xff]
    %v754 = vld [vmem:[#allocation8 + $0xf0] sm:$0xff]
    %v755 = vld [vmem:[#allocation8 + $0xf8] sm:$0xff]
    %v756 = vld [vmem:[#allocation10] sm:$0xff]
    %v757 = vld [vmem:[#allocation10 + $0x8] sm:$0xff]
    %v758 = vld [vmem:[#allocation10 + $0x10] sm:$0xff]
    %v759 = vld [vmem:[#allocation10 + $0x18] sm:$0xff]
    %v760 = vld [vmem:[#allocation10 + $0x20] sm:$0xff]
    %v761 = vld [vmem:[#allocation10 + $0x28] sm:$0xff]
    %v762 = vld [vmem:[#allocation10 + $0x30] sm:$0xff]
    %v763 = vld [vmem:[#allocation10 + $0x38] sm:$0xff]
    %v764 = vld [vmem:[#allocation10 + $0x40] sm:$0xff]
    %v765 = vld [vmem:[#allocation10 + $0x48] sm:$0xff]
    %v766 = vld [vmem:[#allocation10 + $0x50] sm:$0xff]
    %v767 = vld [vmem:[#allocation10 + $0x58] sm:$0xff]
    %v768 = vld [vmem:[#allocation10 + $0x60] sm:$0xff]
    %v769 = vld [vmem:[#allocation10 + $0x68] sm:$0xff]
    %v770 = vld [vmem:[#allocation10 + $0x70] sm:$0xff]
    %v771 = vld [vmem:[#allocation10 + $0x78] sm:$0xff]
    %v772 = vld [vmem:[#allocation10 + $0x80] sm:$0xff]
    %v773 = vld [vmem:[#allocation10 + $0x88] sm:$0xff]
    %v774 = vld [vmem:[#allocation10 + $0x90] sm:$0xff]
    %v775 = vld [vmem:[#allocation10 + $0x98] sm:$0xff]
    %v776 = vld [vmem:[#allocation10 + $0xa0] sm:$0xff]
    %v777 = vld [vmem:[#allocation10 + $0xa8] sm:$0xff]
    %v778 = vld [vmem:[#allocation10 + $0xb0] sm:$0xff]
    %v779 = vld [vmem:[#allocation10 + $0xb8] sm:$0xff]
    %v780 = vld [vmem:[#allocation10 + $0xc0] sm:$0xff]
    %v781 = vld [vmem:[#allocation10 + $0xc8] sm:$0xff]
    %v782 = vld [vmem:[#allocation10 + $0xd0] sm:$0xff]
    %v783 = vld [vmem:[#allocation10 + $0xd8] sm:$0xff]
    %v784 = vld [vmem:[#allocation10 + $0xe0] sm:$0xff]
    %v785 = vld [vmem:[#allocation10 + $0xe8] sm:$0xff]
    %v786 = vld [vmem:[#allocation10 + $0xf0] sm:$0xff]
    %v787 = vld [vmem:[#allocation10 + $0xf8] sm:$0xff]
    %788 = vmatprep.subr.mxu0 0.0
    %789 = vmatpush1.msra.mxu0 %v756
    %790 = vmatprep.subr.mxu0 0.0
    %791 = vmatpush1.msra.mxu0 %v757
    %792 = vmatprep.subr.mxu0 0.0
    %793 = vmatpush1.msra.mxu0 %v758
    %794 = vmatprep.subr.mxu0 0.0
    %795 = vmatpush1.msra.mxu0 %v759
    %796 = vmatprep.subr.mxu0 0.0
    %797 = vmatpush1.msra.mxu0 %v760
    %798 = vmatprep.subr.mxu0 0.0
    %799 = vmatpush1.msra.mxu0 %v761
    %800 = vmatprep.subr.mxu0 0.0
    %801 = vmatpush1.msra.mxu0 %v762
    %802 = vmatprep.subr.mxu0 0.0
    %803 = vmatpush1.msra.mxu0 %v763
    %804 = vmatprep.subr.mxu0 0.0
    %805 = vmatpush1.msra.mxu0 %v764
    %806 = vmatprep.subr.mxu0 0.0
    %807 = vmatpush1.msra.mxu0 %v765
    %808 = vmatprep.subr.mxu0 0.0
    %809 = vmatpush1.msra.mxu0 %v766
    %810 = vmatprep.subr.mxu0 0.0
    %811 = vmatpush1.msra.mxu0 %v767
    %812 = vmatprep.subr.mxu0 0.0
    %813 = vmatpush1.msra.mxu0 %v768
    %814 = vmatprep.subr.mxu0 0.0
    %815 = vmatpush1.msra.mxu0 %v769
    %816 = vmatprep.subr.mxu0 0.0
    %817 = vmatpush1.msra.mxu0 %v770
    %818 = vmatprep.subr.mxu0 0.0
    %819 = vmatpush1.msra.mxu0 %v771
    %820 = vmatprep.subr.mxu0 0.0
    %821 = vmatpush1.msra.mxu0 %v772
    %822 = vmatprep.subr.mxu0 0.0
    %823 = vmatpush1.msra.mxu0 %v773
    %824 = vmatprep.subr.mxu0 0.0
    %825 = vmatpush1.msra.mxu0 %v774
    %826 = vmatprep.subr.mxu0 0.0
    %827 = vmatpush1.msra.mxu0 %v775
    %828 = vmatprep.subr.mxu0 0.0
    %829 = vmatpush1.msra.mxu0 %v776
    %830 = vmatprep.subr.mxu0 0.0
    %831 = vmatpush1.msra.mxu0 %v777
    %832 = vmatprep.subr.mxu0 0.0
    %833 = vmatpush1.msra.mxu0 %v778
    %834 = vmatprep.subr.mxu0 0.0
    %835 = vmatpush1.msra.mxu0 %v779
    %836 = vmatprep.subr.mxu0 0.0
    %837 = vmatpush1.msra.mxu0 %v780
    %838 = vmatprep.subr.mxu0 0.0
    %839 = vmatpush1.msra.mxu0 %v781
    %840 = vmatprep.subr.mxu0 0.0
    %841 = vmatpush1.msra.mxu0 %v782
    %842 = vmatprep.subr.mxu0 0.0
    %843 = vmatpush1.msra.mxu0 %v783
    %844 = vmatprep.subr.mxu0 0.0
    %845 = vmatpush1.msra.mxu0 %v784
    %846 = vmatprep.subr.mxu0 0.0
    %847 = vmatpush1.msra.mxu0 %v785
    %848 = vmatprep.subr.mxu0 0.0
    %849 = vmatpush1.msra.mxu0 %v786
    %850 = vmatprep.subr.mxu0 0.0
    %851 = vmatpush1.msra.mxu0 %v787
    %852 = vmatprep.mubr.f32.mxu0 %v423
    %853 = vmatmul.mubr.f32.gmra.mrb[0].mxu0 %v422
    %v854 = vpop.f32.mrb[0].mxu0
    %v855 = vadd.f32 0.0, %v854
    %v856 = vpop.f32.mrb[0].mxu0
    %857 = vdwg.mxu0
    %858 = vmatprep.subr.mxu0 0.0
    %859 = vmatpush1.msra.mxu0 %v724
    %860 = vmatprep.subr.mxu0 0.0
    %861 = vmatpush1.msra.mxu0 %v725
    %862 = vmatprep.subr.mxu0 0.0
    %863 = vmatpush1.msra.mxu0 %v726
    %864 = vmatprep.subr.mxu0 0.0
    %865 = vmatpush1.msra.mxu0 %v727
    %866 = vmatprep.subr.mxu0 0.0
    %867 = vmatpush1.msra.mxu0 %v728
    %868 = vmatprep.subr.mxu0 0.0
    %869 = vmatpush1.msra.mxu0 %v729
    %870 = vmatprep.subr.mxu0 0.0
    %871 = vmatpush1.msra.mxu0 %v730
    %872 = vmatprep.subr.mxu0 0.0
    %873 = vmatpush1.msra.mxu0 %v731
    %874 = vmatprep.subr.mxu0 0.0
    %875 = vmatpush1.msra.mxu0 %v732
    %876 = vmatprep.subr.mxu0 0.0
    %877 = vmatpush1.msra.mxu0 %v733
    %878 = vmatprep.subr.mxu0 0.0
    %879 = vmatpush1.msra.mxu0 %v734
    %880 = vmatprep.subr.mxu0 0.0
    %881 = vmatpush1.msra.mxu0 %v735
    %882 = vmatprep.subr.mxu0 0.0
    %883 = vmatpush1.msra.mxu0 %v736
    %884 = vmatprep.subr.mxu0 0.0
    %885 = vmatpush1.msra.mxu0 %v737
    %886 = vmatprep.subr.mxu0 0.0
    %887 = vmatpush1.msra.mxu0 %v738
    %888 = vmatprep.subr.mxu0 0.0
    %889 = vmatpush1.msra.mxu0 %v739
    %890 = vmatprep.subr.mxu0 0.0
    %891 = vmatpush1.msra.mxu0 %v740
    %892 = vmatprep.subr.mxu0 0.0
    %893 = vmatpush1.msra.mxu0 %v741
    %894 = vmatprep.subr.mxu0 0.0
    %895 = vmatpush1.msra.mxu0 %v742
    %896 = vmatprep.subr.mxu0 0.0
    %897 = vmatpush1.msra.mxu0 %v743
    %898 = vmatprep.subr.mxu0 0.0
    %899 = vmatpush1.msra.mxu0 %v744
    %900 = vmatprep.subr.mxu0 0.0
    %901 = vmatpush1.msra.mxu0 %v745
    %902 = vmatprep.subr.mxu0 0.0
    %903 = vmatpush1.msra.mxu0 %v746
    %904 = vmatprep.subr.mxu0 0.0
    %905 = vmatpush1.msra.mxu0 %v747
    %906 = vmatprep.subr.mxu0 0.0
    %907 = vmatpush1.msra.mxu0 %v748
    %908 = vmatprep.subr.mxu0 0.0
    %909 = vmatpush1.msra.mxu0 %v749
    %910 = vmatprep.subr.mxu0 0.0
    %911 = vmatpush1.msra.mxu0 %v750
    %912 = vmatprep.subr.mxu0 0.0
    %913 = vmatpush1.msra.mxu0 %v751
    %914 = vmatprep.subr.mxu0 0.0
    %915 = vmatpush1.msra.mxu0 %v752
    %916 = vmatprep.subr.mxu0 0.0
    %917 = vmatpush1.msra.mxu0 %v753
    %918 = vmatprep.subr.mxu0 0.0
    %919 = vmatpush1.msra.mxu0 %v754
    %920 = vmatprep.subr.mxu0 0.0
    %921 = vmatpush1.msra.mxu0 %v755
    %922 = vmatprep.mubr.f32.mxu0 %v723
    %923 = vmatmul.mubr.f32.gmra.mrb[0].mxu0 %v722
    %v924 = vpop.f32.mrb[0].mxu0
    %v925 = vadd.f32 %v855, %v924
    %v926 = vpop.f32.mrb[0].mxu0
    %927 = vdwg.mxu0
    %v928 = vld [vmem:[%s7] sm:$0x1]
    %v930 = vlaneseq
    %v931 = vshrl.u32 %v930, 7
    %v932 = vsub.s32 0, %v931
    %v933 = vrot.slane %v928, %v932
    %v935 = vadd.f32 %v925, %v933
    %936 = vst [vmem:[#allocation11] sm:$0xff] %v935
    // Predicated region
    $region54: #{tpu_custom_call.1} parent=1 // pred_check
      _
    $region55: #{tpu_custom_call.1} parent=1 // pred_check_branch
      %938 = sbr.rel (0) target = $region57
    $region56: #{tpu_custom_call.1} parent=1 // pred_region
      %s940 = ssub.s32 128, 128
      %941 = vsyncadd [#allocation4], %s940
      %s943 = sshll.u32 [#allocation11], 4
      %s944 = int_to_ptr.vmem [resolvable:$true] %s943
      %946 = dma.vmem_to_hbm [thread:$0]  %s944, 128, %s8, [#allocation4]
    $region57: #{tpu_custom_call.1} parent=1 // pred_fallthru
      _
    // Predicated region
    $region58: #{tpu_custom_call.1} parent=1 // pred_check
      _
    $region59: #{tpu_custom_call.1} parent=1 // pred_check_branch
      %948 = sbr.rel (0) target = $region61
    $region60: #{tpu_custom_call.1} parent=1 // pred_region
      %949 = dma.done [#allocation4], 128
    $region61: #{tpu_custom_call.1} parent=1 // pred_fallthru
      _
    %950 = vsyncpa [#allocation3], 1
    %951 = vsyncpa [#allocation6], 1
    %952 = vsyncpa [#allocation9], 1
    %953 = vsyncpa [#allocation4], 1

</llo_original>
